<compile_context>
chip_gen: v7x
topology: tpu7x:2x2x1
jax: 0.10.0
libtpu: 0.0.40
codegen_flags: <defaults>
</compile_context>

<pallas_src>
import jax
import jax.numpy as jnp
from jax import lax
from jax.experimental import pallas as pl
from jax.experimental.pallas import tpu as pltpu


def gam_rhn_kernel(xproj_ref,          # [chunk_T, Bblk, 2H]  bf16, x@[Wg|Wt] + [bg|bt]
                   r_ref,              # [H, 2H]  bf16 fused [Rg|Rt]
                   wfc_ref,            # [H, C]   bf16
                   bfc_ref,            # [1, C]   f32
                   out_ref,            # [Bblk, C] f32 logits (resident per batch block)
                   h_scratch):         # [Bblk, H] f32 hidden-state carry across time chunks
    t_blk = pl.program_id(1)
    chunk = xproj_ref.shape[0]
    H = h_scratch.shape[1]

    # New batch block => reset hidden state.
    @pl.when(t_blk == 0)
    def _init():
        h_scratch[...] = jnp.zeros_like(h_scratch)

    # Hoist the recurrent weight load out of the time loop (JAX does not CSE).
    r = r_ref[...]                                    # [H, 2H] bf16

    def step(t, h):
        # Input projection + bias were folded in the wrapper; only h@[Rg|Rt] here.
        pre = xproj_ref[t].astype(jnp.float32) + jnp.dot(
            h.astype(r.dtype), r, preferred_element_type=jnp.float32)   # [Bblk, 2H] f32
        g = jnp.tanh(pre[:, :H])                      # lane-aligned split (H % 128 == 0)
        tr = lax.logistic(pre[:, H:])                 # single EUP logistic op
        return h + tr * (g - h)

    # Carry h in vregs across the chunk; bounded unroll keeps code size / vreg
    # pressure in check while still giving the LLO scheduler visibility.
    h = lax.fori_loop(0, chunk, step, h_scratch[...], unroll=min(8, chunk))
    h_scratch[...] = h

    # Final fully-connected layer on the last hidden state of this batch block.
    @pl.when(t_blk == pl.num_programs(1) - 1)
    def _finalize():
        out_ref[...] = (
            jnp.dot(h.astype(wfc_ref.dtype), wfc_ref[...],
                    preferred_element_type=jnp.float32)
            + bfc_ref[...]
        )


def _round_up(x, m):
    return ((x + m - 1) // m) * m


def _pick_batch_block(B):
    """Largest divisor of B that is a multiple of 8 and <= 256 (fills the MXU M
    dim); prefer leaving >= 2 batch blocks (two v7x TensorCores) when the block
    can stay >= 128.  Falls back to the full batch (allowed by Mosaic)."""
    candidates = [d for d in range(8, min(B, 256) + 1, 8) if B % d == 0]
    if not candidates:
        return B
    best = max(candidates)
    if best == B:
        halved = [d for d in candidates if d <= B // 2 and d >= 128]
        if halved:
            best = max(halved)
    return best


def _pick_chunk_t(T, target=64):
    """Largest divisor of T that is <= target (amortizes ~0.35us/grid-step)."""
    best = 1
    for d in range(1, min(T, target) + 1):
        if T % d == 0:
            best = d
    return best


def gam_rhn_forward(tokens, params, *, chunk_t=None, batch_block=None,
                    compute_dtype=jnp.bfloat16):
    """tokens: int32 [B, T]; params: dict of weights. Returns logits [B, C]."""
    emb_table = params["embedding"]                 # [V, E]
    B, T = tokens.shape
    H = params["rg"].shape[0]
    C = params["wfc"].shape[1]
    E = emb_table.shape[1]

    # Pad hidden / class dims to the 128-lane tile so the gate split is a free
    # sub-view and the output store is lane-dense.  Zero-padding is exact:
    # padded columns of W/R/b are 0  =>  g_pad = tanh(0) = 0, t_pad = 0.5,
    # h_pad stays 0 forever; padded rows/cols of Wfc contribute 0 and padded
    # logit columns are sliced off below.
    H_pad = _round_up(max(H, 128), 128)
    C_pad = _round_up(max(C, 128), 128)
    two_h = 2 * H_pad

    if batch_block is None:
        batch_block = _pick_batch_block(B)
    assert B % batch_block == 0
    assert batch_block % 8 == 0 or batch_block == B, \
        "batch_block must be a multiple of 8 (sublane) unless it equals B"

    if chunk_t is None:
        chunk_t = _pick_chunk_t(T)
    assert T % chunk_t == 0, "T must be divisible by chunk_t (pad in caller if needed)"
    # TODO(synk): if T padding is ever added, padded timesteps must be masked so
    # the highway update does not integrate garbage xproj rows.

    dt_bytes = jnp.dtype(compute_dtype).itemsize

    # VMEM budget: ~75% of physical capacity (=> ~48 MiB on v7x's 64 MiB,
    # ~96 MiB on v5e/v6e's 128 MiB).  Shrink chunk_t if the streamed tiles
    # would not fit.
    try:
        vmem_cap = pltpu.get_tpu_info().vmem_capacity_bytes
    except Exception:
        vmem_cap = 64 * 1024 * 1024
    vmem_limit = min(int(0.75 * vmem_cap), 96 * 1024 * 1024)

    def _vmem_estimate(ct, bblk):
        stream = 2 * ct * bblk * two_h * dt_bytes                       # double-buffered xproj
        weights = 2 * (H_pad * two_h * dt_bytes + H_pad * C_pad * dt_bytes + C_pad * 4)
        return stream + weights + 2 * bblk * C_pad * 4 + bblk * H_pad * 4

    while chunk_t > 1 and _vmem_estimate(chunk_t, batch_block) > int(0.8 * vmem_limit):
        chunk_t = max(d for d in range(1, chunk_t) if T % d == 0)

    def _pad2(a, rows, cols):
        return jnp.pad(a, ((0, rows - a.shape[0]), (0, cols - a.shape[1])))

    # Fuse + pad gate weights / biases.
    w_fused = jnp.concatenate([_pad2(params["wg"], E, H_pad),
                               _pad2(params["wt"], E, H_pad)], axis=1)        # [E, 2H] f32
    r_fused = jnp.concatenate([_pad2(params["rg"], H_pad, H_pad),
                               _pad2(params["rt"], H_pad, H_pad)], axis=1)    # [H, 2H]
    b_fused = jnp.concatenate([_pad2(params["bg"], 1, H_pad),
                               _pad2(params["bt"], 1, H_pad)], axis=1)        # [1, 2H] f32
    wfc = _pad2(params["wfc"], H_pad, C_pad).astype(compute_dtype)            # [H, C]
    bfc = _pad2(params["bfc"], 1, C_pad)                                      # [1, C]  f32
    r_fused = r_fused.astype(compute_dtype)

    # Time-major embedding gather (no [B,T,E] materialize + transpose), input
    # projection hoisted out of the recurrence as one big matmul, bias folded
    # into the projection epilogue, then cast to bf16 for streaming.
    emb_tm = jnp.take(emb_table, tokens.T, axis=0)                            # [T, B, E]
    xproj = (jnp.einsum("tbe,eh->tbh", emb_tm, w_fused) + b_fused).astype(compute_dtype)

    grid = (B // batch_block, T // chunk_t)

    def _run(single_buffer_weights):
        w_kwargs = (dict(pipeline_mode=pl.Buffered(1))
                    if single_buffer_weights else {})
        grid_spec = pltpu.PrefetchScalarGridSpec(
            num_scalar_prefetch=0,
            grid=grid,
            in_specs=[
                # streamed, double-buffered time chunks of the pre-projected input
                pl.BlockSpec((chunk_t, batch_block, two_h), lambda b, t: (t, b, 0)),
                # weights / biases stay resident across the whole grid
                pl.BlockSpec((H_pad, two_h), lambda b, t: (0, 0), **w_kwargs),
                pl.BlockSpec((H_pad, C_pad), lambda b, t: (0, 0), **w_kwargs),
                pl.BlockSpec((1, C_pad), lambda b, t: (0, 0), **w_kwargs),
            ],
            out_specs=pl.BlockSpec((batch_block, C_pad), lambda b, t: (b, 0)),
            scratch_shapes=[pltpu.VMEM((batch_block, H_pad), jnp.float32)],
        )
        return pl.pallas_call(
            gam_rhn_kernel,
            out_shape=jax.ShapeDtypeStruct((B, C_pad), jnp.float32),
            grid_spec=grid_spec,
            compiler_params=pltpu.CompilerParams(
                dimension_semantics=("parallel", "arbitrary"),
                vmem_limit_bytes=vmem_limit,
            ),
        )(xproj, r_fused, wfc, bfc)

    try:
        out = jax.block_until_ready(_run(True))
    except Exception:
        # Installed Pallas rejected single-buffered resident weights; fall back
        # to the default double-buffering (correctness identical).
        out = jax.block_until_ready(_run(False))

    return out[:, :C]


def init_params(key, vocab_size, embedding_dim, hidden_size, num_classes):
    ks = jax.random.split(key, 8)
    scale = 0.1
    return {
        "embedding": scale * jax.random.normal(ks[0], (vocab_size, embedding_dim), jnp.float32),
        "wg": scale * jax.random.normal(ks[1], (embedding_dim, hidden_size), jnp.float32),
        "wt": scale * jax.random.normal(ks[2], (embedding_dim, hidden_size), jnp.float32),
        "rg": scale * jax.random.normal(ks[3], (hidden_size, hidden_size), jnp.float32),
        "rt": scale * jax.random.normal(ks[4], (hidden_size, hidden_size), jnp.float32),
        "bg": jnp.zeros((1, hidden_size), jnp.float32),
        "bt": jnp.zeros((1, hidden_size), jnp.float32),
        "wfc": scale * jax.random.normal(ks[5], (hidden_size, num_classes), jnp.float32),
        "bfc": jnp.zeros((1, num_classes), jnp.float32),
    }


def reference_forward(tokens, params):
    """Pure-JAX f32 reference matching the PyTorch forward semantics."""
    emb = jnp.take(params["embedding"], tokens, axis=0)   # [B, T, E]
    B, T, _ = emb.shape
    H = params["rg"].shape[0]
    h = jnp.zeros((B, H), jnp.float32)
    for t in range(T):
        x_t = emb[:, t, :]
        g = jnp.tanh(x_t @ params["wg"] + h @ params["rg"] + params["bg"])
        tr = jax.nn.sigmoid(x_t @ params["wt"] + h @ params["rt"] + params["bt"])
        h = g * tr + h * (1.0 - tr)
    return h @ params["wfc"] + params["bfc"]


if __name__ == "__main__":
    vocab_size, embedding_dim, hidden_size, num_classes = 16, 32, 32, 8
    batch, seq_len = 2, 8

    key = jax.random.PRNGKey(0)
    k_params, k_tok = jax.random.split(key)
    params = init_params(k_params, vocab_size, embedding_dim, hidden_size, num_classes)
    tokens = jax.random.randint(k_tok, (batch, seq_len), 0, vocab_size, dtype=jnp.int32)

    logits = gam_rhn_forward(tokens, params)
    logits = jax.block_until_ready(logits)

    ref = reference_forward(tokens, params)
    assert logits.shape == (batch, num_classes)
    # bf16 MXU operands (xproj / R / Wfc) => slightly looser tolerance than f32.
    err = float(jnp.max(jnp.abs(logits - ref)))
    assert jnp.allclose(logits, ref, atol=2e-2, rtol=2e-2), f"mismatch vs reference (max abs err {err})"

    print("KERNEL_OK")
</pallas_src>

<mosaic_0001>
module attributes {stable_mosaic.version = 11 : i64} {
  func.func @gam_rhn_kernel(%arg0: i32, %arg1: i32, %arg2: memref<8x2x256xbf16, #tpu.memory_space<vmem>>, %arg3: memref<128x256xbf16, #tpu.memory_space<vmem>>, %arg4: memref<128x128xbf16, #tpu.memory_space<vmem>>, %arg5: memref<1x128xf32, #tpu.memory_space<vmem>>, %arg6: memref<2x128xf32, #tpu.memory_space<vmem>>, %arg7: memref<2x128xf32, #tpu.memory_space<vmem>>) attributes {dimension_semantics = [#tpu.dimension_semantics<parallel>, #tpu.dimension_semantics<arbitrary>], iteration_bounds = array<i64: 1, 1>, scalar_prefetch = 0 : i64, scratch_operands = 1 : i64, tpu.core_type = #tpu.core_type<tc>, window_params = [{transform_indices = @transform_0, window_bounds = array<i64: 8, 2, 256>}, {pipeline_mode = #tpu.pipeline_mode<synchronous>, transform_indices = @transform_1, window_bounds = array<i64: 128, 256>}, {pipeline_mode = #tpu.pipeline_mode<synchronous>, transform_indices = @transform_2, window_bounds = array<i64: 128, 128>}, {pipeline_mode = #tpu.pipeline_mode<synchronous>, transform_indices = @transform_3, window_bounds = array<i64: 1, 128>}, {transform_indices = @transform_4, window_bounds = array<i64: 2, 128>}]} {
    %c0_i32 = arith.constant 0 : i32
    %0 = arith.cmpi eq, %arg1, %c0_i32 : i32
    %1 = arith.extui %0 : i1 to i32
    %c0_i32_0 = arith.constant 0 : i32
    %2 = arith.cmpi ne, %1, %c0_i32_0 : i32
    scf.if %2 {
      %cst_40 = arith.constant 0.000000e+00 : f32
      %153 = vector.broadcast %cst_40 : f32 to vector<2x128xf32>
      %c0_41 = arith.constant 0 : index
      %c0_42 = arith.constant 0 : index
      %154 = vector.load %arg7[%c0_41, %c0_42] : memref<2x128xf32, #tpu.memory_space<vmem>>, vector<2x128xf32>
      tpu.vector_store %arg7[%c0_41, %c0_42], %153 {strides = array<i32>} : memref<2x128xf32, #tpu.memory_space<vmem>>, vector<2x128xf32>,
    } else {
    }
    %c0 = arith.constant 0 : index
    %c0_1 = arith.constant 0 : index
    %3 = vector.load %arg3[%c0, %c0_1] : memref<128x256xbf16, #tpu.memory_space<vmem>>, vector<128x256xbf16>
    %c0_2 = arith.constant 0 : index
    %c0_3 = arith.constant 0 : index
    %4 = vector.load %arg7[%c0_2, %c0_3] : memref<2x128xf32, #tpu.memory_space<vmem>>, vector<2x128xf32>
    %c0_i32_4 = arith.constant 0 : i32
    %5 = arith.index_cast %c0_i32_4 : i32 to index
    %c0_5 = arith.constant 0 : index
    %c0_6 = arith.constant 0 : index
    %6 = vector.load %arg2[%5, %c0_5, %c0_6] : memref<8x2x256xbf16, #tpu.memory_space<vmem>>, vector<1x2x256xbf16>
    %7 = vector.shape_cast %6 : vector<1x2x256xbf16> to vector<2x256xbf16>
    %8 = arith.extf %7 : vector<2x256xbf16> to vector<2x256xf32>
    %9 = arith.truncf %4 : vector<2x128xf32> to vector<2x128xbf16>
    %cst = arith.constant dense<0.000000e+00> : vector<2x256xf32>
    %10 = tpu.matmul %9, %3, %cst {dimension_numbers = #tpu.dot_dimension_numbers<[1], [0], [0], [1], [0, 0, 1, 1], [], []>} : vector<2x128xbf16>, vector<128x256xbf16>, vector<2x256xf32> -> vector<2x256xf32>
    %11 = arith.addf %8, %10 : vector<2x256xf32>
    %12 = vector.extract_strided_slice %11 {offsets = [0, 0], sizes = [2, 128], strides = [1, 1]} : vector<2x256xf32> to vector<2x128xf32>
    %13 = math.tanh %12 : vector<2x128xf32>
    %14 = vector.extract_strided_slice %11 {offsets = [0, 128], sizes = [2, 128], strides = [1, 1]} : vector<2x256xf32> to vector<2x128xf32>
    %15 = arith.negf %14 : vector<2x128xf32>
    %16 = math.exp %15 : vector<2x128xf32>
    %cst_7 = arith.constant 1.000000e+00 : f32
    %17 = vector.broadcast %cst_7 : f32 to vector<2x128xf32>
    %18 = arith.addf %17, %16 : vector<2x128xf32>
    %19 = arith.divf %17, %18 : vector<2x128xf32>
    %20 = arith.subf %13, %4 : vector<2x128xf32>
    %21 = arith.mulf %19, %20 : vector<2x128xf32>
    %22 = arith.addf %4, %21 : vector<2x128xf32>
    %c1_i32 = arith.constant 1 : i32
    %23 = arith.index_cast %c1_i32 : i32 to index
    %c0_8 = arith.constant 0 : index
    %c0_9 = arith.constant 0 : index
    %24 = vector.load %arg2[%23, %c0_8, %c0_9] : memref<8x2x256xbf16, #tpu.memory_space<vmem>>, vector<1x2x256xbf16>
    %25 = vector.shape_cast %24 : vector<1x2x256xbf16> to vector<2x256xbf16>
    %26 = arith.extf %25 : vector<2x256xbf16> to vector<2x256xf32>
    %27 = arith.truncf %22 : vector<2x128xf32> to vector<2x128xbf16>
    %cst_10 = arith.constant dense<0.000000e+00> : vector<2x256xf32>
    %28 = tpu.matmul %27, %3, %cst_10 {dimension_numbers = #tpu.dot_dimension_numbers<[1], [0], [0], [1], [0, 0, 1, 1], [], []>} : vector<2x128xbf16>, vector<128x256xbf16>, vector<2x256xf32> -> vector<2x256xf32>
    %29 = arith.addf %26, %28 : vector<2x256xf32>
    %30 = vector.extract_strided_slice %29 {offsets = [0, 0], sizes = [2, 128], strides = [1, 1]} : vector<2x256xf32> to vector<2x128xf32>
    %31 = math.tanh %30 : vector<2x128xf32>
    %32 = vector.extract_strided_slice %29 {offsets = [0, 128], sizes = [2, 128], strides = [1, 1]} : vector<2x256xf32> to vector<2x128xf32>
    %33 = arith.negf %32 : vector<2x128xf32>
    %34 = math.exp %33 : vector<2x128xf32>
    %cst_11 = arith.constant 1.000000e+00 : f32
    %35 = vector.broadcast %cst_11 : f32 to vector<2x128xf32>
    %36 = arith.addf %35, %34 : vector<2x128xf32>
    %37 = arith.divf %35, %36 : vector<2x128xf32>
    %38 = arith.subf %31, %22 : vector<2x128xf32>
    %39 = arith.mulf %37, %38 : vector<2x128xf32>
    %40 = arith.addf %22, %39 : vector<2x128xf32>
    %c2_i32 = arith.constant 2 : i32
    %41 = arith.index_cast %c2_i32 : i32 to index
    %c0_12 = arith.constant 0 : index
    %c0_13 = arith.constant 0 : index
    %42 = vector.load %arg2[%41, %c0_12, %c0_13] : memref<8x2x256xbf16, #tpu.memory_space<vmem>>, vector<1x2x256xbf16>
    %43 = vector.shape_cast %42 : vector<1x2x256xbf16> to vector<2x256xbf16>
    %44 = arith.extf %43 : vector<2x256xbf16> to vector<2x256xf32>
    %45 = arith.truncf %40 : vector<2x128xf32> to vector<2x128xbf16>
    %cst_14 = arith.constant dense<0.000000e+00> : vector<2x256xf32>
    %46 = tpu.matmul %45, %3, %cst_14 {dimension_numbers = #tpu.dot_dimension_numbers<[1], [0], [0], [1], [0, 0, 1, 1], [], []>} : vector<2x128xbf16>, vector<128x256xbf16>, vector<2x256xf32> -> vector<2x256xf32>
    %47 = arith.addf %44, %46 : vector<2x256xf32>
    %48 = vector.extract_strided_slice %47 {offsets = [0, 0], sizes = [2, 128], strides = [1, 1]} : vector<2x256xf32> to vector<2x128xf32>
    %49 = math.tanh %48 : vector<2x128xf32>
    %50 = vector.extract_strided_slice %47 {offsets = [0, 128], sizes = [2, 128], strides = [1, 1]} : vector<2x256xf32> to vector<2x128xf32>
    %51 = arith.negf %50 : vector<2x128xf32>
    %52 = math.exp %51 : vector<2x128xf32>
    %cst_15 = arith.constant 1.000000e+00 : f32
    %53 = vector.broadcast %cst_15 : f32 to vector<2x128xf32>
    %54 = arith.addf %53, %52 : vector<2x128xf32>
    %55 = arith.divf %53, %54 : vector<2x128xf32>
    %56 = arith.subf %49, %40 : vector<2x128xf32>
    %57 = arith.mulf %55, %56 : vector<2x128xf32>
    %58 = arith.addf %40, %57 : vector<2x128xf32>
    %c3_i32 = arith.constant 3 : i32
    %59 = arith.index_cast %c3_i32 : i32 to index
    %c0_16 = arith.constant 0 : index
    %c0_17 = arith.constant 0 : index
    %60 = vector.load %arg2[%59, %c0_16, %c0_17] : memref<8x2x256xbf16, #tpu.memory_space<vmem>>, vector<1x2x256xbf16>
    %61 = vector.shape_cast %60 : vector<1x2x256xbf16> to vector<2x256xbf16>
    %62 = arith.extf %61 : vector<2x256xbf16> to vector<2x256xf32>
    %63 = arith.truncf %58 : vector<2x128xf32> to vector<2x128xbf16>
    %cst_18 = arith.constant dense<0.000000e+00> : vector<2x256xf32>
    %64 = tpu.matmul %63, %3, %cst_18 {dimension_numbers = #tpu.dot_dimension_numbers<[1], [0], [0], [1], [0, 0, 1, 1], [], []>} : vector<2x128xbf16>, vector<128x256xbf16>, vector<2x256xf32> -> vector<2x256xf32>
    %65 = arith.addf %62, %64 : vector<2x256xf32>
    %66 = vector.extract_strided_slice %65 {offsets = [0, 0], sizes = [2, 128], strides = [1, 1]} : vector<2x256xf32> to vector<2x128xf32>
    %67 = math.tanh %66 : vector<2x128xf32>
    %68 = vector.extract_strided_slice %65 {offsets = [0, 128], sizes = [2, 128], strides = [1, 1]} : vector<2x256xf32> to vector<2x128xf32>
    %69 = arith.negf %68 : vector<2x128xf32>
    %70 = math.exp %69 : vector<2x128xf32>
    %cst_19 = arith.constant 1.000000e+00 : f32
    %71 = vector.broadcast %cst_19 : f32 to vector<2x128xf32>
    %72 = arith.addf %71, %70 : vector<2x128xf32>
    %73 = arith.divf %71, %72 : vector<2x128xf32>
    %74 = arith.subf %67, %58 : vector<2x128xf32>
    %75 = arith.mulf %73, %74 : vector<2x128xf32>
    %76 = arith.addf %58, %75 : vector<2x128xf32>
    %c4_i32 = arith.constant 4 : i32
    %77 = arith.index_cast %c4_i32 : i32 to index
    %c0_20 = arith.constant 0 : index
    %c0_21 = arith.constant 0 : index
    %78 = vector.load %arg2[%77, %c0_20, %c0_21] : memref<8x2x256xbf16, #tpu.memory_space<vmem>>, vector<1x2x256xbf16>
    %79 = vector.shape_cast %78 : vector<1x2x256xbf16> to vector<2x256xbf16>
    %80 = arith.extf %79 : vector<2x256xbf16> to vector<2x256xf32>
    %81 = arith.truncf %76 : vector<2x128xf32> to vector<2x128xbf16>
    %cst_22 = arith.constant dense<0.000000e+00> : vector<2x256xf32>
    %82 = tpu.matmul %81, %3, %cst_22 {dimension_numbers = #tpu.dot_dimension_numbers<[1], [0], [0], [1], [0, 0, 1, 1], [], []>} : vector<2x128xbf16>, vector<128x256xbf16>, vector<2x256xf32> -> vector<2x256xf32>
    %83 = arith.addf %80, %82 : vector<2x256xf32>
    %84 = vector.extract_strided_slice %83 {offsets = [0, 0], sizes = [2, 128], strides = [1, 1]} : vector<2x256xf32> to vector<2x128xf32>
    %85 = math.tanh %84 : vector<2x128xf32>
    %86 = vector.extract_strided_slice %83 {offsets = [0, 128], sizes = [2, 128], strides = [1, 1]} : vector<2x256xf32> to vector<2x128xf32>
    %87 = arith.negf %86 : vector<2x128xf32>
    %88 = math.exp %87 : vector<2x128xf32>
    %cst_23 = arith.constant 1.000000e+00 : f32
    %89 = vector.broadcast %cst_23 : f32 to vector<2x128xf32>
    %90 = arith.addf %89, %88 : vector<2x128xf32>
    %91 = arith.divf %89, %90 : vector<2x128xf32>
    %92 = arith.subf %85, %76 : vector<2x128xf32>
    %93 = arith.mulf %91, %92 : vector<2x128xf32>
    %94 = arith.addf %76, %93 : vector<2x128xf32>
    %c5_i32 = arith.constant 5 : i32
    %95 = arith.index_cast %c5_i32 : i32 to index
    %c0_24 = arith.constant 0 : index
    %c0_25 = arith.constant 0 : index
    %96 = vector.load %arg2[%95, %c0_24, %c0_25] : memref<8x2x256xbf16, #tpu.memory_space<vmem>>, vector<1x2x256xbf16>
    %97 = vector.shape_cast %96 : vector<1x2x256xbf16> to vector<2x256xbf16>
    %98 = arith.extf %97 : vector<2x256xbf16> to vector<2x256xf32>
    %99 = arith.truncf %94 : vector<2x128xf32> to vector<2x128xbf16>
    %cst_26 = arith.constant dense<0.000000e+00> : vector<2x256xf32>
    %100 = tpu.matmul %99, %3, %cst_26 {dimension_numbers = #tpu.dot_dimension_numbers<[1], [0], [0], [1], [0, 0, 1, 1], [], []>} : vector<2x128xbf16>, vector<128x256xbf16>, vector<2x256xf32> -> vector<2x256xf32>
    %101 = arith.addf %98, %100 : vector<2x256xf32>
    %102 = vector.extract_strided_slice %101 {offsets = [0, 0], sizes = [2, 128], strides = [1, 1]} : vector<2x256xf32> to vector<2x128xf32>
    %103 = math.tanh %102 : vector<2x128xf32>
    %104 = vector.extract_strided_slice %101 {offsets = [0, 128], sizes = [2, 128], strides = [1, 1]} : vector<2x256xf32> to vector<2x128xf32>
    %105 = arith.negf %104 : vector<2x128xf32>
    %106 = math.exp %105 : vector<2x128xf32>
    %cst_27 = arith.constant 1.000000e+00 : f32
    %107 = vector.broadcast %cst_27 : f32 to vector<2x128xf32>
    %108 = arith.addf %107, %106 : vector<2x128xf32>
    %109 = arith.divf %107, %108 : vector<2x128xf32>
    %110 = arith.subf %103, %94 : vector<2x128xf32>
    %111 = arith.mulf %109, %110 : vector<2x128xf32>
    %112 = arith.addf %94, %111 : vector<2x128xf32>
    %c6_i32 = arith.constant 6 : i32
    %113 = arith.index_cast %c6_i32 : i32 to index
    %c0_28 = arith.constant 0 : index
    %c0_29 = arith.constant 0 : index
    %114 = vector.load %arg2[%113, %c0_28, %c0_29] : memref<8x2x256xbf16, #tpu.memory_space<vmem>>, vector<1x2x256xbf16>
    %115 = vector.shape_cast %114 : vector<1x2x256xbf16> to vector<2x256xbf16>
    %116 = arith.extf %115 : vector<2x256xbf16> to vector<2x256xf32>
    %117 = arith.truncf %112 : vector<2x128xf32> to vector<2x128xbf16>
    %cst_30 = arith.constant dense<0.000000e+00> : vector<2x256xf32>
    %118 = tpu.matmul %117, %3, %cst_30 {dimension_numbers = #tpu.dot_dimension_numbers<[1], [0], [0], [1], [0, 0, 1, 1], [], []>} : vector<2x128xbf16>, vector<128x256xbf16>, vector<2x256xf32> -> vector<2x256xf32>
    %119 = arith.addf %116, %118 : vector<2x256xf32>
    %120 = vector.extract_strided_slice %119 {offsets = [0, 0], sizes = [2, 128], strides = [1, 1]} : vector<2x256xf32> to vector<2x128xf32>
    %121 = math.tanh %120 : vector<2x128xf32>
    %122 = vector.extract_strided_slice %119 {offsets = [0, 128], sizes = [2, 128], strides = [1, 1]} : vector<2x256xf32> to vector<2x128xf32>
    %123 = arith.negf %122 : vector<2x128xf32>
    %124 = math.exp %123 : vector<2x128xf32>
    %cst_31 = arith.constant 1.000000e+00 : f32
    %125 = vector.broadcast %cst_31 : f32 to vector<2x128xf32>
    %126 = arith.addf %125, %124 : vector<2x128xf32>
    %127 = arith.divf %125, %126 : vector<2x128xf32>
    %128 = arith.subf %121, %112 : vector<2x128xf32>
    %129 = arith.mulf %127, %128 : vector<2x128xf32>
    %130 = arith.addf %112, %129 : vector<2x128xf32>
    %c7_i32 = arith.constant 7 : i32
    %131 = arith.index_cast %c7_i32 : i32 to index
    %c0_32 = arith.constant 0 : index
    %c0_33 = arith.constant 0 : index
    %132 = vector.load %arg2[%131, %c0_32, %c0_33] : memref<8x2x256xbf16, #tpu.memory_space<vmem>>, vector<1x2x256xbf16>
    %133 = vector.shape_cast %132 : vector<1x2x256xbf16> to vector<2x256xbf16>
    %134 = arith.extf %133 : vector<2x256xbf16> to vector<2x256xf32>
    %135 = arith.truncf %130 : vector<2x128xf32> to vector<2x128xbf16>
    %cst_34 = arith.constant dense<0.000000e+00> : vector<2x256xf32>
    %136 = tpu.matmul %135, %3, %cst_34 {dimension_numbers = #tpu.dot_dimension_numbers<[1], [0], [0], [1], [0, 0, 1, 1], [], []>} : vector<2x128xbf16>, vector<128x256xbf16>, vector<2x256xf32> -> vector<2x256xf32>
    %137 = arith.addf %134, %136 : vector<2x256xf32>
    %138 = vector.extract_strided_slice %137 {offsets = [0, 0], sizes = [2, 128], strides = [1, 1]} : vector<2x256xf32> to vector<2x128xf32>
    %139 = math.tanh %138 : vector<2x128xf32>
    %140 = vector.extract_strided_slice %137 {offsets = [0, 128], sizes = [2, 128], strides = [1, 1]} : vector<2x256xf32> to vector<2x128xf32>
    %141 = arith.negf %140 : vector<2x128xf32>
    %142 = math.exp %141 : vector<2x128xf32>
    %cst_35 = arith.constant 1.000000e+00 : f32
    %143 = vector.broadcast %cst_35 : f32 to vector<2x128xf32>
    %144 = arith.addf %143, %142 : vector<2x128xf32>
    %145 = arith.divf %143, %144 : vector<2x128xf32>
    %146 = arith.subf %139, %130 : vector<2x128xf32>
    %147 = arith.mulf %145, %146 : vector<2x128xf32>
    %148 = arith.addf %130, %147 : vector<2x128xf32>
    %c8_i32 = arith.constant 8 : i32
    %c0_36 = arith.constant 0 : index
    %c0_37 = arith.constant 0 : index
    %149 = vector.load %arg7[%c0_36, %c0_37] : memref<2x128xf32, #tpu.memory_space<vmem>>, vector<2x128xf32>
    tpu.vector_store %arg7[%c0_36, %c0_37], %148 {strides = array<i32>} : memref<2x128xf32, #tpu.memory_space<vmem>>, vector<2x128xf32>,
    %c0_i32_38 = arith.constant 0 : i32
    %150 = arith.cmpi eq, %arg1, %c0_i32_38 : i32
    %151 = arith.extui %150 : i1 to i32
    %c0_i32_39 = arith.constant 0 : i32
    %152 = arith.cmpi ne, %151, %c0_i32_39 : i32
    scf.if %152 {
      %153 = arith.truncf %148 : vector<2x128xf32> to vector<2x128xbf16>
      %c0_40 = arith.constant 0 : index
      %c0_41 = arith.constant 0 : index
      %154 = vector.load %arg4[%c0_40, %c0_41] : memref<128x128xbf16, #tpu.memory_space<vmem>>, vector<128x128xbf16>
      %cst_42 = arith.constant dense<0.000000e+00> : vector<2x128xf32>
      %155 = tpu.matmul %153, %154, %cst_42 {dimension_numbers = #tpu.dot_dimension_numbers<[1], [0], [0], [1], [0, 0, 1, 1], [], []>} : vector<2x128xbf16>, vector<128x128xbf16>, vector<2x128xf32> -> vector<2x128xf32>
      %c0_43 = arith.constant 0 : index
      %c0_44 = arith.constant 0 : index
      %156 = vector.load %arg5[%c0_43, %c0_44] : memref<1x128xf32, #tpu.memory_space<vmem>>, vector<1x128xf32>
      %157 = vector.broadcast %156 : vector<1x128xf32> to vector<2x128xf32>
      %158 = arith.addf %155, %157 : vector<2x128xf32>
      %c0_45 = arith.constant 0 : index
      %c0_46 = arith.constant 0 : index
      %159 = vector.load %arg6[%c0_45, %c0_46] : memref<2x128xf32, #tpu.memory_space<vmem>>, vector<2x128xf32>
      tpu.vector_store %arg6[%c0_45, %c0_46], %158 {strides = array<i32>} : memref<2x128xf32, #tpu.memory_space<vmem>>, vector<2x128xf32>,
    } else {
    }
    return
  }
  func.func @transform_0(%arg0: i32, %arg1: i32) -> (i32, i32, i32) {
    %c0_i32 = arith.constant 0 : i32
    %c0_i32_0 = arith.constant 0 : i32
    return %arg1, %arg0, %c0_i32 : i32, i32, i32
  }
  func.func @transform_1(%arg0: i32, %arg1: i32) -> (i32, i32) {
    %c0_i32 = arith.constant 0 : i32
    %c0_i32_0 = arith.constant 0 : i32
    %c0_i32_1 = arith.constant 0 : i32
    return %c0_i32, %c0_i32_0 : i32, i32
  }
  func.func @transform_2(%arg0: i32, %arg1: i32) -> (i32, i32) {
    %c0_i32 = arith.constant 0 : i32
    %c0_i32_0 = arith.constant 0 : i32
    %c0_i32_1 = arith.constant 0 : i32
    return %c0_i32, %c0_i32_0 : i32, i32
  }
  func.func @transform_3(%arg0: i32, %arg1: i32) -> (i32, i32) {
    %c0_i32 = arith.constant 0 : i32
    %c0_i32_0 = arith.constant 0 : i32
    %c0_i32_1 = arith.constant 0 : i32
    return %c0_i32, %c0_i32_0 : i32, i32
  }
  func.func @transform_4(%arg0: i32, %arg1: i32) -> (i32, i32) {
    %c0_i32 = arith.constant 0 : i32
    %c0_i32_0 = arith.constant 0 : i32
    return %arg0, %c0_i32 : i32, i32
  }
}

module attributes {stable_mosaic.version = 11 : i64} {
  func.func @gam_rhn_kernel(%arg0: i32, %arg1: i32, %arg2: memref<8x2x256xbf16, #tpu.memory_space<vmem>>, %arg3: memref<128x256xbf16, #tpu.memory_space<vmem>>, %arg4: memref<128x128xbf16, #tpu.memory_space<vmem>>, %arg5: memref<1x128xf32, #tpu.memory_space<vmem>>, %arg6: memref<2x128xf32, #tpu.memory_space<vmem>>, %arg7: memref<2x128xf32, #tpu.memory_space<vmem>>) attributes {dimension_semantics = [#tpu.dimension_semantics<parallel>, #tpu.dimension_semantics<arbitrary>], iteration_bounds = array<i64: 1, 1>, scalar_prefetch = 0 : i64, scratch_operands = 1 : i64, tpu.core_type = #tpu.core_type<tc>, window_params = [{transform_indices = @transform_0, window_bounds = array<i64: 8, 2, 256>}, {pipeline_mode = #tpu.pipeline_mode<synchronous>, transform_indices = @transform_1, window_bounds = array<i64: 128, 256>}, {pipeline_mode = #tpu.pipeline_mode<synchronous>, transform_indices = @transform_2, window_bounds = array<i64: 128, 128>}, {pipeline_mode = #tpu.pipeline_mode<synchronous>, transform_indices = @transform_3, window_bounds = array<i64: 1, 128>}, {transform_indices = @transform_4, window_bounds = array<i64: 2, 128>}]} {
    %c0_i32 = arith.constant 0 : i32
    %0 = arith.cmpi eq, %arg1, %c0_i32 : i32
    %1 = arith.extui %0 : i1 to i32
    %c0_i32_0 = arith.constant 0 : i32
    %2 = arith.cmpi ne, %1, %c0_i32_0 : i32
    scf.if %2 {
      %cst_40 = arith.constant 0.000000e+00 : f32
      %153 = vector.broadcast %cst_40 : f32 to vector<2x128xf32>
      %c0_41 = arith.constant 0 : index
      %c0_42 = arith.constant 0 : index
      %154 = vector.load %arg7[%c0_41, %c0_42] : memref<2x128xf32, #tpu.memory_space<vmem>>, vector<2x128xf32>
      tpu.vector_store %arg7[%c0_41, %c0_42], %153 {strides = array<i32>} : memref<2x128xf32, #tpu.memory_space<vmem>>, vector<2x128xf32>,
    } else {
    }
    %c0 = arith.constant 0 : index
    %c0_1 = arith.constant 0 : index
    %3 = vector.load %arg3[%c0, %c0_1] : memref<128x256xbf16, #tpu.memory_space<vmem>>, vector<128x256xbf16>
    %c0_2 = arith.constant 0 : index
    %c0_3 = arith.constant 0 : index
    %4 = vector.load %arg7[%c0_2, %c0_3] : memref<2x128xf32, #tpu.memory_space<vmem>>, vector<2x128xf32>
    %c0_i32_4 = arith.constant 0 : i32
    %5 = arith.index_cast %c0_i32_4 : i32 to index
    %c0_5 = arith.constant 0 : index
    %c0_6 = arith.constant 0 : index
    %6 = vector.load %arg2[%5, %c0_5, %c0_6] : memref<8x2x256xbf16, #tpu.memory_space<vmem>>, vector<1x2x256xbf16>
    %7 = vector.shape_cast %6 : vector<1x2x256xbf16> to vector<2x256xbf16>
    %8 = arith.extf %7 : vector<2x256xbf16> to vector<2x256xf32>
    %9 = arith.truncf %4 : vector<2x128xf32> to vector<2x128xbf16>
    %cst = arith.constant dense<0.000000e+00> : vector<2x256xf32>
    %10 = tpu.matmul %9, %3, %cst {dimension_numbers = #tpu.dot_dimension_numbers<[1], [0], [0], [1], [0, 0, 1, 1], [], []>} : vector<2x128xbf16>, vector<128x256xbf16>, vector<2x256xf32> -> vector<2x256xf32>
    %11 = arith.addf %8, %10 : vector<2x256xf32>
    %12 = vector.extract_strided_slice %11 {offsets = [0, 0], sizes = [2, 128], strides = [1, 1]} : vector<2x256xf32> to vector<2x128xf32>
    %13 = math.tanh %12 : vector<2x128xf32>
    %14 = vector.extract_strided_slice %11 {offsets = [0, 128], sizes = [2, 128], strides = [1, 1]} : vector<2x256xf32> to vector<2x128xf32>
    %15 = arith.negf %14 : vector<2x128xf32>
    %16 = math.exp %15 : vector<2x128xf32>
    %cst_7 = arith.constant 1.000000e+00 : f32
    %17 = vector.broadcast %cst_7 : f32 to vector<2x128xf32>
    %18 = arith.addf %17, %16 : vector<2x128xf32>
    %19 = arith.divf %17, %18 : vector<2x128xf32>
    %20 = arith.subf %13, %4 : vector<2x128xf32>
    %21 = arith.mulf %19, %20 : vector<2x128xf32>
    %22 = arith.addf %4, %21 : vector<2x128xf32>
    %c1_i32 = arith.constant 1 : i32
    %23 = arith.index_cast %c1_i32 : i32 to index
    %c0_8 = arith.constant 0 : index
    %c0_9 = arith.constant 0 : index
    %24 = vector.load %arg2[%23, %c0_8, %c0_9] : memref<8x2x256xbf16, #tpu.memory_space<vmem>>, vector<1x2x256xbf16>
    %25 = vector.shape_cast %24 : vector<1x2x256xbf16> to vector<2x256xbf16>
    %26 = arith.extf %25 : vector<2x256xbf16> to vector<2x256xf32>
    %27 = arith.truncf %22 : vector<2x128xf32> to vector<2x128xbf16>
    %cst_10 = arith.constant dense<0.000000e+00> : vector<2x256xf32>
    %28 = tpu.matmul %27, %3, %cst_10 {dimension_numbers = #tpu.dot_dimension_numbers<[1], [0], [0], [1], [0, 0, 1, 1], [], []>} : vector<2x128xbf16>, vector<128x256xbf16>, vector<2x256xf32> -> vector<2x256xf32>
    %29 = arith.addf %26, %28 : vector<2x256xf32>
    %30 = vector.extract_strided_slice %29 {offsets = [0, 0], sizes = [2, 128], strides = [1, 1]} : vector<2x256xf32> to vector<2x128xf32>
    %31 = math.tanh %30 : vector<2x128xf32>
    %32 = vector.extract_strided_slice %29 {offsets = [0, 128], sizes = [2, 128], strides = [1, 1]} : vector<2x256xf32> to vector<2x128xf32>
    %33 = arith.negf %32 : vector<2x128xf32>
    %34 = math.exp %33 : vector<2x128xf32>
    %cst_11 = arith.constant 1.000000e+00 : f32
    %35 = vector.broadcast %cst_11 : f32 to vector<2x128xf32>
    %36 = arith.addf %35, %34 : vector<2x128xf32>
    %37 = arith.divf %35, %36 : vector<2x128xf32>
    %38 = arith.subf %31, %22 : vector<2x128xf32>
    %39 = arith.mulf %37, %38 : vector<2x128xf32>
    %40 = arith.addf %22, %39 : vector<2x128xf32>
    %c2_i32 = arith.constant 2 : i32
    %41 = arith.index_cast %c2_i32 : i32 to index
    %c0_12 = arith.constant 0 : index
    %c0_13 = arith.constant 0 : index
    %42 = vector.load %arg2[%41, %c0_12, %c0_13] : memref<8x2x256xbf16, #tpu.memory_space<vmem>>, vector<1x2x256xbf16>
    %43 = vector.shape_cast %42 : vector<1x2x256xbf16> to vector<2x256xbf16>
    %44 = arith.extf %43 : vector<2x256xbf16> to vector<2x256xf32>
    %45 = arith.truncf %40 : vector<2x128xf32> to vector<2x128xbf16>
    %cst_14 = arith.constant dense<0.000000e+00> : vector<2x256xf32>
    %46 = tpu.matmul %45, %3, %cst_14 {dimension_numbers = #tpu.dot_dimension_numbers<[1], [0], [0], [1], [0, 0, 1, 1], [], []>} : vector<2x128xbf16>, vector<128x256xbf16>, vector<2x256xf32> -> vector<2x256xf32>
    %47 = arith.addf %44, %46 : vector<2x256xf32>
    %48 = vector.extract_strided_slice %47 {offsets = [0, 0], sizes = [2, 128], strides = [1, 1]} : vector<2x256xf32> to vector<2x128xf32>
    %49 = math.tanh %48 : vector<2x128xf32>
    %50 = vector.extract_strided_slice %47 {offsets = [0, 128], sizes = [2, 128], strides = [1, 1]} : vector<2x256xf32> to vector<2x128xf32>
    %51 = arith.negf %50 : vector<2x128xf32>
    %52 = math.exp %51 : vector<2x128xf32>
    %cst_15 = arith.constant 1.000000e+00 : f32
    %53 = vector.broadcast %cst_15 : f32 to vector<2x128xf32>
    %54 = arith.addf %53, %52 : vector<2x128xf32>
    %55 = arith.divf %53, %54 : vector<2x128xf32>
    %56 = arith.subf %49, %40 : vector<2x128xf32>
    %57 = arith.mulf %55, %56 : vector<2x128xf32>
    %58 = arith.addf %40, %57 : vector<2x128xf32>
    %c3_i32 = arith.constant 3 : i32
    %59 = arith.index_cast %c3_i32 : i32 to index
    %c0_16 = arith.constant 0 : index
    %c0_17 = arith.constant 0 : index
    %60 = vector.load %arg2[%59, %c0_16, %c0_17] : memref<8x2x256xbf16, #tpu.memory_space<vmem>>, vector<1x2x256xbf16>
    %61 = vector.shape_cast %60 : vector<1x2x256xbf16> to vector<2x256xbf16>
    %62 = arith.extf %61 : vector<2x256xbf16> to vector<2x256xf32>
    %63 = arith.truncf %58 : vector<2x128xf32> to vector<2x128xbf16>
    %cst_18 = arith.constant dense<0.000000e+00> : vector<2x256xf32>
    %64 = tpu.matmul %63, %3, %cst_18 {dimension_numbers = #tpu.dot_dimension_numbers<[1], [0], [0], [1], [0, 0, 1, 1], [], []>} : vector<2x128xbf16>, vector<128x256xbf16>, vector<2x256xf32> -> vector<2x256xf32>
    %65 = arith.addf %62, %64 : vector<2x256xf32>
    %66 = vector.extract_strided_slice %65 {offsets = [0, 0], sizes = [2, 128], strides = [1, 1]} : vector<2x256xf32> to vector<2x128xf32>
    %67 = math.tanh %66 : vector<2x128xf32>
    %68 = vector.extract_strided_slice %65 {offsets = [0, 128], sizes = [2, 128], strides = [1, 1]} : vector<2x256xf32> to vector<2x128xf32>
    %69 = arith.negf %68 : vector<2x128xf32>
    %70 = math.exp %69 : vector<2x128xf32>
    %cst_19 = arith.constant 1.000000e+00 : f32
    %71 = vector.broadcast %cst_19 : f32 to vector<2x128xf32>
    %72 = arith.addf %71, %70 : vector<2x128xf32>
    %73 = arith.divf %71, %72 : vector<2x128xf32>
    %74 = arith.subf %67, %58 : vector<2x128xf32>
    %75 = arith.mulf %73, %74 : vector<2x128xf32>
    %76 = arith.addf %58, %75 : vector<2x128xf32>
    %c4_i32 = arith.constant 4 : i32
    %77 = arith.index_cast %c4_i32 : i32 to index
    %c0_20 = arith.constant 0 : index
    %c0_21 = arith.constant 0 : index
    %78 = vector.load %arg2[%77, %c0_20, %c0_21] : memref<8x2x256xbf16, #tpu.memory_space<vmem>>, vector<1x2x256xbf16>
    %79 = vector.shape_cast %78 : vector<1x2x256xbf16> to vector<2x256xbf16>
    %80 = arith.extf %79 : vector<2x256xbf16> to vector<2x256xf32>
    %81 = arith.truncf %76 : vector<2x128xf32> to vector<2x128xbf16>
    %cst_22 = arith.constant dense<0.000000e+00> : vector<2x256xf32>
    %82 = tpu.matmul %81, %3, %cst_22 {dimension_numbers = #tpu.dot_dimension_numbers<[1], [0], [0], [1], [0, 0, 1, 1], [], []>} : vector<2x128xbf16>, vector<128x256xbf16>, vector<2x256xf32> -> vector<2x256xf32>
    %83 = arith.addf %80, %82 : vector<2x256xf32>
    %84 = vector.extract_strided_slice %83 {offsets = [0, 0], sizes = [2, 128], strides = [1, 1]} : vector<2x256xf32> to vector<2x128xf32>
    %85 = math.tanh %84 : vector<2x128xf32>
    %86 = vector.extract_strided_slice %83 {offsets = [0, 128], sizes = [2, 128], strides = [1, 1]} : vector<2x256xf32> to vector<2x128xf32>
    %87 = arith.negf %86 : vector<2x128xf32>
    %88 = math.exp %87 : vector<2x128xf32>
    %cst_23 = arith.constant 1.000000e+00 : f32
    %89 = vector.broadcast %cst_23 : f32 to vector<2x128xf32>
    %90 = arith.addf %89, %88 : vector<2x128xf32>
    %91 = arith.divf %89, %90 : vector<2x128xf32>
    %92 = arith.subf %85, %76 : vector<2x128xf32>
    %93 = arith.mulf %91, %92 : vector<2x128xf32>
    %94 = arith.addf %76, %93 : vector<2x128xf32>
    %c5_i32 = arith.constant 5 : i32
    %95 = arith.index_cast %c5_i32 : i32 to index
    %c0_24 = arith.constant 0 : index
    %c0_25 = arith.constant 0 : index
    %96 = vector.load %arg2[%95, %c0_24, %c0_25] : memref<8x2x256xbf16, #tpu.memory_space<vmem>>, vector<1x2x256xbf16>
    %97 = vector.shape_cast %96 : vector<1x2x256xbf16> to vector<2x256xbf16>
    %98 = arith.extf %97 : vector<2x256xbf16> to vector<2x256xf32>
    %99 = arith.truncf %94 : vector<2x128xf32> to vector<2x128xbf16>
    %cst_26 = arith.constant dense<0.000000e+00> : vector<2x256xf32>
    %100 = tpu.matmul %99, %3, %cst_26 {dimension_numbers = #tpu.dot_dimension_numbers<[1], [0], [0], [1], [0, 0, 1, 1], [], []>} : vector<2x128xbf16>, vector<128x256xbf16>, vector<2x256xf32> -> vector<2x256xf32>
    %101 = arith.addf %98, %100 : vector<2x256xf32>
    %102 = vector.extract_strided_slice %101 {offsets = [0, 0], sizes = [2, 128], strides = [1, 1]} : vector<2x256xf32> to vector<2x128xf32>
    %103 = math.tanh %102 : vector<2x128xf32>
    %104 = vector.extract_strided_slice %101 {offsets = [0, 128], sizes = [2, 128], strides = [1, 1]} : vector<2x256xf32> to vector<2x128xf32>
    %105 = arith.negf %104 : vector<2x128xf32>
    %106 = math.exp %105 : vector<2x128xf32>
    %cst_27 = arith.constant 1.000000e+00 : f32
    %107 = vector.broadcast %cst_27 : f32 to vector<2x128xf32>
    %108 = arith.addf %107, %106 : vector<2x128xf32>
    %109 = arith.divf %107, %108 : vector<2x128xf32>
    %110 = arith.subf %103, %94 : vector<2x128xf32>
    %111 = arith.mulf %109, %110 : vector<2x128xf32>
    %112 = arith.addf %94, %111 : vector<2x128xf32>
    %c6_i32 = arith.constant 6 : i32
    %113 = arith.index_cast %c6_i32 : i32 to index
    %c0_28 = arith.constant 0 : index
    %c0_29 = arith.constant 0 : index
    %114 = vector.load %arg2[%113, %c0_28, %c0_29] : memref<8x2x256xbf16, #tpu.memory_space<vmem>>, vector<1x2x256xbf16>
    %115 = vector.shape_cast %114 : vector<1x2x256xbf16> to vector<2x256xbf16>
    %116 = arith.extf %115 : vector<2x256xbf16> to vector<2x256xf32>
    %117 = arith.truncf %112 : vector<2x128xf32> to vector<2x128xbf16>
    %cst_30 = arith.constant dense<0.000000e+00> : vector<2x256xf32>
    %118 = tpu.matmul %117, %3, %cst_30 {dimension_numbers = #tpu.dot_dimension_numbers<[1], [0], [0], [1], [0, 0, 1, 1], [], []>} : vector<2x128xbf16>, vector<128x256xbf16>, vector<2x256xf32> -> vector<2x256xf32>
    %119 = arith.addf %116, %118 : vector<2x256xf32>
    %120 = vector.extract_strided_slice %119 {offsets = [0, 0], sizes = [2, 128], strides = [1, 1]} : vector<2x256xf32> to vector<2x128xf32>
    %121 = math.tanh %120 : vector<2x128xf32>
    %122 = vector.extract_strided_slice %119 {offsets = [0, 128], sizes = [2, 128], strides = [1, 1]} : vector<2x256xf32> to vector<2x128xf32>
    %123 = arith.negf %122 : vector<2x128xf32>
    %124 = math.exp %123 : vector<2x128xf32>
    %cst_31 = arith.constant 1.000000e+00 : f32
    %125 = vector.broadcast %cst_31 : f32 to vector<2x128xf32>
    %126 = arith.addf %125, %124 : vector<2x128xf32>
    %127 = arith.divf %125, %126 : vector<2x128xf32>
    %128 = arith.subf %121, %112 : vector<2x128xf32>
    %129 = arith.mulf %127, %128 : vector<2x128xf32>
    %130 = arith.addf %112, %129 : vector<2x128xf32>
    %c7_i32 = arith.constant 7 : i32
    %131 = arith.index_cast %c7_i32 : i32 to index
    %c0_32 = arith.constant 0 : index
    %c0_33 = arith.constant 0 : index
    %132 = vector.load %arg2[%131, %c0_32, %c0_33] : memref<8x2x256xbf16, #tpu.memory_space<vmem>>, vector<1x2x256xbf16>
    %133 = vector.shape_cast %132 : vector<1x2x256xbf16> to vector<2x256xbf16>
    %134 = arith.extf %133 : vector<2x256xbf16> to vector<2x256xf32>
    %135 = arith.truncf %130 : vector<2x128xf32> to vector<2x128xbf16>
    %cst_34 = arith.constant dense<0.000000e+00> : vector<2x256xf32>
    %136 = tpu.matmul %135, %3, %cst_34 {dimension_numbers = #tpu.dot_dimension_numbers<[1], [0], [0], [1], [0, 0, 1, 1], [], []>} : vector<2x128xbf16>, vector<128x256xbf16>, vector<2x256xf32> -> vector<2x256xf32>
    %137 = arith.addf %134, %136 : vector<2x256xf32>
    %138 = vector.extract_strided_slice %137 {offsets = [0, 0], sizes = [2, 128], strides = [1, 1]} : vector<2x256xf32> to vector<2x128xf32>
    %139 = math.tanh %138 : vector<2x128xf32>
    %140 = vector.extract_strided_slice %137 {offsets = [0, 128], sizes = [2, 128], strides = [1, 1]} : vector<2x256xf32> to vector<2x128xf32>
    %141 = arith.negf %140 : vector<2x128xf32>
    %142 = math.exp %141 : vector<2x128xf32>
    %cst_35 = arith.constant 1.000000e+00 : f32
    %143 = vector.broadcast %cst_35 : f32 to vector<2x128xf32>
    %144 = arith.addf %143, %142 : vector<2x128xf32>
    %145 = arith.divf %143, %144 : vector<2x128xf32>
    %146 = arith.subf %139, %130 : vector<2x128xf32>
    %147 = arith.mulf %145, %146 : vector<2x128xf32>
    %148 = arith.addf %130, %147 : vector<2x128xf32>
    %c8_i32 = arith.constant 8 : i32
    %c0_36 = arith.constant 0 : index
    %c0_37 = arith.constant 0 : index
    %149 = vector.load %arg7[%c0_36, %c0_37] : memref<2x128xf32, #tpu.memory_space<vmem>>, vector<2x128xf32>
    tpu.vector_store %arg7[%c0_36, %c0_37], %148 {strides = array<i32>} : memref<2x128xf32, #tpu.memory_space<vmem>>, vector<2x128xf32>,
    %c0_i32_38 = arith.constant 0 : i32
    %150 = arith.cmpi eq, %arg1, %c0_i32_38 : i32
    %151 = arith.extui %150 : i1 to i32
    %c0_i32_39 = arith.constant 0 : i32
    %152 = arith.cmpi ne, %151, %c0_i32_39 : i32
    scf.if %152 {
      %153 = arith.truncf %148 : vector<2x128xf32> to vector<2x128xbf16>
      %c0_40 = arith.constant 0 : index
      %c0_41 = arith.constant 0 : index
      %154 = vector.load %arg4[%c0_40, %c0_41] : memref<128x128xbf16, #tpu.memory_space<vmem>>, vector<128x128xbf16>
      %cst_42 = arith.constant dense<0.000000e+00> : vector<2x128xf32>
      %155 = tpu.matmul %153, %154, %cst_42 {dimension_numbers = #tpu.dot_dimension_numbers<[1], [0], [0], [1], [0, 0, 1, 1], [], []>} : vector<2x128xbf16>, vector<128x128xbf16>, vector<2x128xf32> -> vector<2x128xf32>
      %c0_43 = arith.constant 0 : index
      %c0_44 = arith.constant 0 : index
      %156 = vector.load %arg5[%c0_43, %c0_44] : memref<1x128xf32, #tpu.memory_space<vmem>>, vector<1x128xf32>
      %157 = vector.broadcast %156 : vector<1x128xf32> to vector<2x128xf32>
      %158 = arith.addf %155, %157 : vector<2x128xf32>
      %c0_45 = arith.constant 0 : index
      %c0_46 = arith.constant 0 : index
      %159 = vector.load %arg6[%c0_45, %c0_46] : memref<2x128xf32, #tpu.memory_space<vmem>>, vector<2x128xf32>
      tpu.vector_store %arg6[%c0_45, %c0_46], %158 {strides = array<i32>} : memref<2x128xf32, #tpu.memory_space<vmem>>, vector<2x128xf32>,
    } else {
    }
    return
  }
  func.func @transform_0(%arg0: i32, %arg1: i32) -> (i32, i32, i32) {
    %c0_i32 = arith.constant 0 : i32
    %c0_i32_0 = arith.constant 0 : i32
    return %arg1, %arg0, %c0_i32 : i32, i32, i32
  }
  func.func @transform_1(%arg0: i32, %arg1: i32) -> (i32, i32) {
    %c0_i32 = arith.constant 0 : i32
    %c0_i32_0 = arith.constant 0 : i32
    %c0_i32_1 = arith.constant 0 : i32
    return %c0_i32, %c0_i32_0 : i32, i32
  }
  func.func @transform_2(%arg0: i32, %arg1: i32) -> (i32, i32) {
    %c0_i32 = arith.constant 0 : i32
    %c0_i32_0 = arith.constant 0 : i32
    %c0_i32_1 = arith.constant 0 : i32
    return %c0_i32, %c0_i32_0 : i32, i32
  }
  func.func @transform_3(%arg0: i32, %arg1: i32) -> (i32, i32) {
    %c0_i32 = arith.constant 0 : i32
    %c0_i32_0 = arith.constant 0 : i32
    %c0_i32_1 = arith.constant 0 : i32
    return %c0_i32, %c0_i32_0 : i32, i32
  }
  func.func @transform_4(%arg0: i32, %arg1: i32) -> (i32, i32) {
    %c0_i32 = arith.constant 0 : i32
    %c0_i32_0 = arith.constant 0 : i32
    return %arg0, %c0_i32 : i32, i32
  }
}

</mosaic_0001>

<llo_original>
// kernel: tpu_custom_call.1
$region0: #{tpu_custom_call.1}
  #allocation0 [shape = 'u32[]', space=smem, size = 0x4, offset = 0x4, fixed_abs, tag = 'smem constant byte address 0x4 - core index']
  #allocation1 [shape = 'u32[144,128]{1,0:T(1,128)}', space=vmem, size = 0x12000, scoped, tag = 'internal scratch']
  #allocation2 [shape = 'f32[2,128]{1,0:T(2,128)}', space=vmem, size = 0x400, scoped, tag = 'scratch operand']
  %s0 = inlined_call_operand.hbm [shape: bf16[8,2,256], index: 0, kind: input, shape index: {}]
  %s1 = inlined_call_operand.hbm [shape: bf16[128,256], index: 1, kind: input, shape index: {}]
  %s2 = inlined_call_operand.hbm [shape: bf16[128,128], index: 2, kind: input, shape index: {}]
  %s3 = inlined_call_operand.vmem [shape: f32[1,128], index: 3, kind: input, shape index: {}]
  %s4 = inlined_call_operand.hbm [shape: f32[2,128], index: 4, kind: output, shape index: {}]
  %s5 = sld [smem:[#allocation0]]
  $region46: #{tpu_custom_call.1} parent=0
    _
  %s7 = ssub.s32 1, %s5
  %s8 = scalar_select 0, %s7, %s5
  $region1: #{tpu_custom_call.1} parent=0
    #allocation3 [shape = 'u8[8192]{0}', space=vmem, size = 0x2000, scoped, tag = 'input window, operand 0, single buffered']
    #allocation4 [shape = 's32[1]{0}', space=sflag, size = 0x4, scoped, tag = 'scoped memory for tpu_custom_call.1']
    #allocation5 [shape = 's32[1]{0}', space=sflag, size = 0x4, scoped, tag = 'scoped memory for tpu_custom_call.1']
    #allocation6 [shape = 'u8[65536]{0}', space=vmem, size = 0x10000, scoped, tag = 'input window, operand 1, single buffered']
    #allocation7 [shape = 's32[1]{0}', space=sflag, size = 0x4, scoped, tag = 'scoped memory for tpu_custom_call.1']
    #allocation8 [shape = 'u8[32768]{0}', space=vmem, size = 0x8000, scoped, tag = 'input window, operand 2, single buffered']
    #allocation9 [shape = 'u8[1024]{0}', space=vmem, size = 0x400, scoped, tag = 'output window, operand 0, single buffered']
    %9 = vsyncpa [#allocation4], 0
    %10 = vsyncpa [#allocation7], 0
    %11 = vsyncpa [#allocation5], 0
    // Predicated region
    $region2: #{tpu_custom_call.1} parent=1 // pred_check
      _
    $region3: #{tpu_custom_call.1} parent=1 // pred_check_branch
      %13 = sbr.rel (0) target = $region5
    $region4: #{tpu_custom_call.1} parent=1 // pred_region
      %s15 = ssub.s32 256, 256
      %16 = vsyncadd [#allocation4], %s15
      %s17 = sshll.u32 [#allocation3], 4
      %s18 = int_to_ptr.vmem [resolvable:$true] %s17
      %23 = dma.hbm_to_vmem [thread:$0]  %s0, 256, %s18, [#allocation4], 32, 32, 2
    $region5: #{tpu_custom_call.1} parent=1 // pred_fallthru
      _
    // Predicated region
    $region6: #{tpu_custom_call.1} parent=1 // pred_check
      _
    $region7: #{tpu_custom_call.1} parent=1 // pred_check_branch
      %25 = sbr.rel (0) target = $region9
    $region8: #{tpu_custom_call.1} parent=1 // pred_region
      %s27 = ssub.s32 2048, 2048
      %28 = vsyncadd [#allocation7], %s27
      %s29 = sshll.u32 [#allocation6], 4
      %s30 = int_to_ptr.vmem [resolvable:$true] %s29
      %35 = dma.hbm_to_vmem [thread:$0]  %s1, 2048, %s30, [#allocation7], 128, 128, 8
    $region9: #{tpu_custom_call.1} parent=1 // pred_fallthru
      _
    // Predicated region
    $region10: #{tpu_custom_call.1} parent=1 // pred_check
      _
    $region11: #{tpu_custom_call.1} parent=1 // pred_check_branch
      %37 = sbr.rel (0) target = $region13
    $region12: #{tpu_custom_call.1} parent=1 // pred_region
      %s39 = ssub.s32 1024, 1024
      %40 = vsyncadd [#allocation7], %s39
      %s41 = sshll.u32 [#allocation8], 4
      %s42 = int_to_ptr.vmem [resolvable:$true] %s41
      %47 = dma.hbm_to_vmem [thread:$0]  %s2, 1024, %s42, [#allocation7], 64, 64, 4
    $region13: #{tpu_custom_call.1} parent=1 // pred_fallthru
      _
    // Predicated region
    $region14: #{tpu_custom_call.1} parent=1 // pred_check
      _
    $region15: #{tpu_custom_call.1} parent=1 // pred_check_branch
      %49 = sbr.rel (0) target = $region17
    $region16: #{tpu_custom_call.1} parent=1 // pred_region
      _
    $region17: #{tpu_custom_call.1} parent=1 // pred_fallthru
      _
    // Predicated region
    $region18: #{tpu_custom_call.1} parent=1 // pred_check
      _
    $region19: #{tpu_custom_call.1} parent=1 // pred_check_branch
      %51 = sbr.rel (0) target = $region21
    $region20: #{tpu_custom_call.1} parent=1 // pred_region
      %52 = dma.done [#allocation4], 256
    $region21: #{tpu_custom_call.1} parent=1 // pred_fallthru
      _
    // Predicated region
    $region22: #{tpu_custom_call.1} parent=1 // pred_check
      _
    $region23: #{tpu_custom_call.1} parent=1 // pred_check_branch
      %54 = sbr.rel (0) target = $region25
    $region24: #{tpu_custom_call.1} parent=1 // pred_region
      %55 = dma.done [#allocation7], 2048
    $region25: #{tpu_custom_call.1} parent=1 // pred_fallthru
      _
    // Predicated region
    $region26: #{tpu_custom_call.1} parent=1 // pred_check
      _
    $region27: #{tpu_custom_call.1} parent=1 // pred_check_branch
      %57 = sbr.rel (0) target = $region29
    $region28: #{tpu_custom_call.1} parent=1 // pred_region
      %58 = dma.done [#allocation7], 1024
    $region29: #{tpu_custom_call.1} parent=1 // pred_fallthru
      _
    %p60 = scmp.eq.s32.totalorder 0, 0
    // Predicated region
    $region30: #{tpu_custom_call.1} parent=1 // pred_check
      %p61 = pneg %p60
    $region31: #{tpu_custom_call.1} parent=1 // pred_check_branch
      %63 = sbr.rel (%p61) target = $region33
    $region32: #{tpu_custom_call.1} parent=1 // pred_region
      %64 = vst [vmem:[#allocation2] sm:$0x3] 0.0
    $region33: #{tpu_custom_call.1} parent=1 // pred_fallthru
      _
    %v65 = vld [vmem:[#allocation6] sm:$0xff]
    %v66 = vld [vmem:[#allocation6 + $0x8] sm:$0xff]
    %v67 = vld [vmem:[#allocation6 + $0x10] sm:$0xff]
    %v68 = vld [vmem:[#allocation6 + $0x18] sm:$0xff]
    %v69 = vld [vmem:[#allocation6 + $0x20] sm:$0xff]
    %v70 = vld [vmem:[#allocation6 + $0x28] sm:$0xff]
    %v71 = vld [vmem:[#allocation6 + $0x30] sm:$0xff]
    %v72 = vld [vmem:[#allocation6 + $0x38] sm:$0xff]
    %v73 = vld [vmem:[#allocation6 + $0x40] sm:$0xff]
    %v74 = vld [vmem:[#allocation6 + $0x48] sm:$0xff]
    %v75 = vld [vmem:[#allocation6 + $0x50] sm:$0xff]
    %v76 = vld [vmem:[#allocation6 + $0x58] sm:$0xff]
    %v77 = vld [vmem:[#allocation6 + $0x60] sm:$0xff]
    %v78 = vld [vmem:[#allocation6 + $0x68] sm:$0xff]
    %v79 = vld [vmem:[#allocation6 + $0x70] sm:$0xff]
    %v80 = vld [vmem:[#allocation6 + $0x78] sm:$0xff]
    %v81 = vld [vmem:[#allocation2] sm:$0x3]
    %v82 = vld [vmem:[#allocation3] sm:$0x3]
    %v83 = vunpack.c.l.bf16 %v82
    %v84 = vpack.c.bf16 %v81, %v81
    %v101 = vunpack.c.l.b16 %v65
    %v102 = vunpack.c.h.b16 %v65
    %v103 = vunpack.c.l.b16 %v66
    %v104 = vunpack.c.h.b16 %v66
    %v105 = vunpack.c.l.b16 %v67
    %v106 = vunpack.c.h.b16 %v67
    %v107 = vunpack.c.l.b16 %v68
    %v108 = vunpack.c.h.b16 %v68
    %v109 = vunpack.c.l.b16 %v69
    %v110 = vunpack.c.h.b16 %v69
    %v111 = vunpack.c.l.b16 %v70
    %v112 = vunpack.c.h.b16 %v70
    %v113 = vunpack.c.l.b16 %v71
    %v114 = vunpack.c.h.b16 %v71
    %v115 = vunpack.c.l.b16 %v72
    %v116 = vunpack.c.h.b16 %v72
    %v117 = vunpack.c.l.b16 %v73
    %v118 = vunpack.c.h.b16 %v73
    %v119 = vunpack.c.l.b16 %v74
    %v120 = vunpack.c.h.b16 %v74
    %v121 = vunpack.c.l.b16 %v75
    %v122 = vunpack.c.h.b16 %v75
    %v123 = vunpack.c.l.b16 %v76
    %v124 = vunpack.c.h.b16 %v76
    %v125 = vunpack.c.l.b16 %v77
    %v126 = vunpack.c.h.b16 %v77
    %v127 = vunpack.c.l.b16 %v78
    %v128 = vunpack.c.h.b16 %v78
    %v129 = vunpack.c.l.b16 %v79
    %v130 = vunpack.c.h.b16 %v79
    %v131 = vunpack.c.l.b16 %v80
    %v132 = vunpack.c.h.b16 %v80
    %v133 = vpack.c.b16 %v103, %v101
    %v134 = vpack.c.b16 %v104, %v102
    %v135 = vpack.c.b16 %v107, %v105
    %v136 = vpack.c.b16 %v108, %v106
    %v137 = vpack.c.b16 %v111, %v109
    %v138 = vpack.c.b16 %v112, %v110
    %v139 = vpack.c.b16 %v115, %v113
    %v140 = vpack.c.b16 %v116, %v114
    %v141 = vpack.c.b16 %v119, %v117
    %v142 = vpack.c.b16 %v120, %v118
    %v143 = vpack.c.b16 %v123, %v121
    %v144 = vpack.c.b16 %v124, %v122
    %v145 = vpack.c.b16 %v127, %v125
    %v146 = vpack.c.b16 %v128, %v126
    %v147 = vpack.c.b16 %v131, %v129
    %v148 = vpack.c.b16 %v132, %v130
    %165 = vmatprep.subr.bf16.mxu0 %v134
    %166 = vmatpush1.bf16.msra.mxu0 %v133
    %167 = vmatprep.subr.bf16.mxu0 %v136
    %168 = vmatpush1.bf16.msra.mxu0 %v135
    %169 = vmatprep.subr.bf16.mxu0 %v138
    %170 = vmatpush1.bf16.msra.mxu0 %v137
    %171 = vmatprep.subr.bf16.mxu0 %v140
    %172 = vmatpush1.bf16.msra.mxu0 %v139
    %173 = vmatprep.subr.bf16.mxu0 %v142
    %174 = vmatpush1.bf16.msra.mxu0 %v141
    %175 = vmatprep.subr.bf16.mxu0 %v144
    %176 = vmatpush1.bf16.msra.mxu0 %v143
    %177 = vmatprep.subr.bf16.mxu0 %v146
    %178 = vmatpush1.bf16.msra.mxu0 %v145
    %179 = vmatprep.subr.bf16.mxu0 %v148
    %180 = vmatpush1.bf16.msra.mxu0 %v147
    %181 = vmatprep.subr.bf16.mxu0 0
    %182 = vmatpush1.bf16.msra.mxu0 0
    %183 = vmatprep.subr.bf16.mxu0 0
    %184 = vmatpush1.bf16.msra.mxu0 0
    %185 = vmatprep.subr.bf16.mxu0 0
    %186 = vmatpush1.bf16.msra.mxu0 0
    %187 = vmatprep.subr.bf16.mxu0 0
    %188 = vmatpush1.bf16.msra.mxu0 0
    %189 = vmatprep.subr.bf16.mxu0 0
    %190 = vmatpush1.bf16.msra.mxu0 0
    %191 = vmatprep.subr.bf16.mxu0 0
    %192 = vmatpush1.bf16.msra.mxu0 0
    %193 = vmatprep.subr.bf16.mxu0 0
    %194 = vmatpush1.bf16.msra.mxu0 0
    %195 = vmatprep.subr.bf16.mxu0 0
    %196 = vmatpush1.bf16.msra.mxu0 0
    %197 = vmatprep.mubr.bf16.mxu0 0
    %198 = vmatmul.mubr.bf16.gmra.mrb[0].mxu0 %v84
    %v199 = vpop.f32.mrb[0].mxu0
    %v200 = vadd.f32 0.0, %v199
    %v201 = vpop.f32.mrb[0].mxu0
    %v202 = vadd.f32 0.0, %v201
    %v203 = vpop.f32.mrb[0].mxu0
    %v204 = vpop.f32.mrb[0].mxu0
    %205 = vdwg.mxu0
    %v208 = vcombine.low %v200, %v202
    %v210 = vunpack.c.l.s4 1983009808
    %v211 = vunpack.c.0.s8 %v210
    %v212 = vlaneseq
    %v213 = vshrl.u32 %v212, 7
    %v214 = vsub.s32 %v211, %v213
    %v215 = vrot.slane %v208, %v214
    %v217 = vadd.f32 %v83, %v215
    %v218 = vtanh.pop %v217
    %v220 = vrot.slane %v217, 2
    %v222 = vxor.u32 %v220, 2147483648
    %v223 = vmul.f32 %v222, 1.442695
    %v224 = vpow.pop %v223
    %v225 = vadd.f32 %v224, 1.0
    %v226 = vrcp.pop %v225
    %v227 = vmul.f32 1.0, %v226
    %v228 = vsub.f32 %v218, %v81
    %v229 = vmul.f32 %v227, %v228
    %v230 = vadd.f32 %v81, %v229
    %s231 = scalar_lea.vmem [#allocation3], 2
    %v232 = vld [vmem:[%s231] sm:$0x3]
    %v233 = vunpack.c.l.bf16 %v232
    %v234 = vpack.c.bf16 %v230, %v230
    %235 = vmatprep.subr.bf16.mxu0 %v134
    %236 = vmatpush1.bf16.msra.mxu0 %v133
    %237 = vmatprep.subr.bf16.mxu0 %v136
    %238 = vmatpush1.bf16.msra.mxu0 %v135
    %239 = vmatprep.subr.bf16.mxu0 %v138
    %240 = vmatpush1.bf16.msra.mxu0 %v137
    %241 = vmatprep.subr.bf16.mxu0 %v140
    %242 = vmatpush1.bf16.msra.mxu0 %v139
    %243 = vmatprep.subr.bf16.mxu0 %v142
    %244 = vmatpush1.bf16.msra.mxu0 %v141
    %245 = vmatprep.subr.bf16.mxu0 %v144
    %246 = vmatpush1.bf16.msra.mxu0 %v143
    %247 = vmatprep.subr.bf16.mxu0 %v146
    %248 = vmatpush1.bf16.msra.mxu0 %v145
    %249 = vmatprep.subr.bf16.mxu0 %v148
    %250 = vmatpush1.bf16.msra.mxu0 %v147
    %251 = vmatprep.subr.bf16.mxu0 0
    %252 = vmatpush1.bf16.msra.mxu0 0
    %253 = vmatprep.subr.bf16.mxu0 0
    %254 = vmatpush1.bf16.msra.mxu0 0
    %255 = vmatprep.subr.bf16.mxu0 0
    %256 = vmatpush1.bf16.msra.mxu0 0
    %257 = vmatprep.subr.bf16.mxu0 0
    %258 = vmatpush1.bf16.msra.mxu0 0
    %259 = vmatprep.subr.bf16.mxu0 0
    %260 = vmatpush1.bf16.msra.mxu0 0
    %261 = vmatprep.subr.bf16.mxu0 0
    %262 = vmatpush1.bf16.msra.mxu0 0
    %263 = vmatprep.subr.bf16.mxu0 0
    %264 = vmatpush1.bf16.msra.mxu0 0
    %265 = vmatprep.subr.bf16.mxu0 0
    %266 = vmatpush1.bf16.msra.mxu0 0
    %267 = vmatprep.mubr.bf16.mxu0 0
    %268 = vmatmul.mubr.bf16.gmra.mrb[0].mxu0 %v234
    %v269 = vpop.f32.mrb[0].mxu0
    %v270 = vadd.f32 0.0, %v269
    %v271 = vpop.f32.mrb[0].mxu0
    %v272 = vadd.f32 0.0, %v271
    %v273 = vpop.f32.mrb[0].mxu0
    %v274 = vpop.f32.mrb[0].mxu0
    %275 = vdwg.mxu0
    %v278 = vcombine.low %v270, %v272
    %v280 = vunpack.c.l.s4 1983009808
    %v281 = vunpack.c.0.s8 %v280
    %v282 = vlaneseq
    %v283 = vshrl.u32 %v282, 7
    %v284 = vsub.s32 %v281, %v283
    %v285 = vrot.slane %v278, %v284
    %v287 = vadd.f32 %v233, %v285
    %v288 = vtanh.pop %v287
    %v290 = vrot.slane %v287, 2
    %v292 = vxor.u32 %v290, 2147483648
    %v293 = vmul.f32 %v292, 1.442695
    %v294 = vpow.pop %v293
    %v295 = vadd.f32 %v294, 1.0
    %v296 = vrcp.pop %v295
    %v297 = vmul.f32 1.0, %v296
    %v298 = vsub.f32 %v288, %v230
    %v299 = vmul.f32 %v297, %v298
    %v300 = vadd.f32 %v230, %v299
    %s301 = scalar_lea.vmem [#allocation3], 4
    %v302 = vld [vmem:[%s301] sm:$0x3]
    %v303 = vunpack.c.l.bf16 %v302
    %v304 = vpack.c.bf16 %v300, %v300
    %305 = vmatprep.subr.bf16.mxu0 %v134
    %306 = vmatpush1.bf16.msra.mxu0 %v133
    %307 = vmatprep.subr.bf16.mxu0 %v136
    %308 = vmatpush1.bf16.msra.mxu0 %v135
    %309 = vmatprep.subr.bf16.mxu0 %v138
    %310 = vmatpush1.bf16.msra.mxu0 %v137
    %311 = vmatprep.subr.bf16.mxu0 %v140
    %312 = vmatpush1.bf16.msra.mxu0 %v139
    %313 = vmatprep.subr.bf16.mxu0 %v142
    %314 = vmatpush1.bf16.msra.mxu0 %v141
    %315 = vmatprep.subr.bf16.mxu0 %v144
    %316 = vmatpush1.bf16.msra.mxu0 %v143
    %317 = vmatprep.subr.bf16.mxu0 %v146
    %318 = vmatpush1.bf16.msra.mxu0 %v145
    %319 = vmatprep.subr.bf16.mxu0 %v148
    %320 = vmatpush1.bf16.msra.mxu0 %v147
    %321 = vmatprep.subr.bf16.mxu0 0
    %322 = vmatpush1.bf16.msra.mxu0 0
    %323 = vmatprep.subr.bf16.mxu0 0
    %324 = vmatpush1.bf16.msra.mxu0 0
    %325 = vmatprep.subr.bf16.mxu0 0
    %326 = vmatpush1.bf16.msra.mxu0 0
    %327 = vmatprep.subr.bf16.mxu0 0
    %328 = vmatpush1.bf16.msra.mxu0 0
    %329 = vmatprep.subr.bf16.mxu0 0
    %330 = vmatpush1.bf16.msra.mxu0 0
    %331 = vmatprep.subr.bf16.mxu0 0
    %332 = vmatpush1.bf16.msra.mxu0 0
    %333 = vmatprep.subr.bf16.mxu0 0
    %334 = vmatpush1.bf16.msra.mxu0 0
    %335 = vmatprep.subr.bf16.mxu0 0
    %336 = vmatpush1.bf16.msra.mxu0 0
    %337 = vmatprep.mubr.bf16.mxu0 0
    %338 = vmatmul.mubr.bf16.gmra.mrb[0].mxu0 %v304
    %v339 = vpop.f32.mrb[0].mxu0
    %v340 = vadd.f32 0.0, %v339
    %v341 = vpop.f32.mrb[0].mxu0
    %v342 = vadd.f32 0.0, %v341
    %v343 = vpop.f32.mrb[0].mxu0
    %v344 = vpop.f32.mrb[0].mxu0
    %345 = vdwg.mxu0
    %v348 = vcombine.low %v340, %v342
    %v350 = vunpack.c.l.s4 1983009808
    %v351 = vunpack.c.0.s8 %v350
    %v352 = vlaneseq
    %v353 = vshrl.u32 %v352, 7
    %v354 = vsub.s32 %v351, %v353
    %v355 = vrot.slane %v348, %v354
    %v357 = vadd.f32 %v303, %v355
    %v358 = vtanh.pop %v357
    %v360 = vrot.slane %v357, 2
    %v362 = vxor.u32 %v360, 2147483648
    %v363 = vmul.f32 %v362, 1.442695
    %v364 = vpow.pop %v363
    %v365 = vadd.f32 %v364, 1.0
    %v366 = vrcp.pop %v365
    %v367 = vmul.f32 1.0, %v366
    %v368 = vsub.f32 %v358, %v300
    %v369 = vmul.f32 %v367, %v368
    %v370 = vadd.f32 %v300, %v369
    %s371 = scalar_lea.vmem [#allocation3], 6
    %v372 = vld [vmem:[%s371] sm:$0x3]
    %v373 = vunpack.c.l.bf16 %v372
    %v374 = vpack.c.bf16 %v370, %v370
    %375 = vmatprep.subr.bf16.mxu0 %v134
    %376 = vmatpush1.bf16.msra.mxu0 %v133
    %377 = vmatprep.subr.bf16.mxu0 %v136
    %378 = vmatpush1.bf16.msra.mxu0 %v135
    %379 = vmatprep.subr.bf16.mxu0 %v138
    %380 = vmatpush1.bf16.msra.mxu0 %v137
    %381 = vmatprep.subr.bf16.mxu0 %v140
    %382 = vmatpush1.bf16.msra.mxu0 %v139
    %383 = vmatprep.subr.bf16.mxu0 %v142
    %384 = vmatpush1.bf16.msra.mxu0 %v141
    %385 = vmatprep.subr.bf16.mxu0 %v144
    %386 = vmatpush1.bf16.msra.mxu0 %v143
    %387 = vmatprep.subr.bf16.mxu0 %v146
    %388 = vmatpush1.bf16.msra.mxu0 %v145
    %389 = vmatprep.subr.bf16.mxu0 %v148
    %390 = vmatpush1.bf16.msra.mxu0 %v147
    %391 = vmatprep.subr.bf16.mxu0 0
    %392 = vmatpush1.bf16.msra.mxu0 0
    %393 = vmatprep.subr.bf16.mxu0 0
    %394 = vmatpush1.bf16.msra.mxu0 0
    %395 = vmatprep.subr.bf16.mxu0 0
    %396 = vmatpush1.bf16.msra.mxu0 0
    %397 = vmatprep.subr.bf16.mxu0 0
    %398 = vmatpush1.bf16.msra.mxu0 0
    %399 = vmatprep.subr.bf16.mxu0 0
    %400 = vmatpush1.bf16.msra.mxu0 0
    %401 = vmatprep.subr.bf16.mxu0 0
    %402 = vmatpush1.bf16.msra.mxu0 0
    %403 = vmatprep.subr.bf16.mxu0 0
    %404 = vmatpush1.bf16.msra.mxu0 0
    %405 = vmatprep.subr.bf16.mxu0 0
    %406 = vmatpush1.bf16.msra.mxu0 0
    %407 = vmatprep.mubr.bf16.mxu0 0
    %408 = vmatmul.mubr.bf16.gmra.mrb[0].mxu0 %v374
    %v409 = vpop.f32.mrb[0].mxu0
    %v410 = vadd.f32 0.0, %v409
    %v411 = vpop.f32.mrb[0].mxu0
    %v412 = vadd.f32 0.0, %v411
    %v413 = vpop.f32.mrb[0].mxu0
    %v414 = vpop.f32.mrb[0].mxu0
    %415 = vdwg.mxu0
    %v418 = vcombine.low %v410, %v412
    %v420 = vunpack.c.l.s4 1983009808
    %v421 = vunpack.c.0.s8 %v420
    %v422 = vlaneseq
    %v423 = vshrl.u32 %v422, 7
    %v424 = vsub.s32 %v421, %v423
    %v425 = vrot.slane %v418, %v424
    %v427 = vadd.f32 %v373, %v425
    %v428 = vtanh.pop %v427
    %v430 = vrot.slane %v427, 2
    %v432 = vxor.u32 %v430, 2147483648
    %v433 = vmul.f32 %v432, 1.442695
    %v434 = vpow.pop %v433
    %v435 = vadd.f32 %v434, 1.0
    %v436 = vrcp.pop %v435
    %v437 = vmul.f32 1.0, %v436
    %v438 = vsub.f32 %v428, %v370
    %v439 = vmul.f32 %v437, %v438
    %v440 = vadd.f32 %v370, %v439
    %s441 = scalar_lea.vmem [#allocation3], 8
    %v442 = vld [vmem:[%s441] sm:$0x3]
    %v443 = vunpack.c.l.bf16 %v442
    %v444 = vpack.c.bf16 %v440, %v440
    %445 = vmatprep.subr.bf16.mxu0 %v134
    %446 = vmatpush1.bf16.msra.mxu0 %v133
    %447 = vmatprep.subr.bf16.mxu0 %v136
    %448 = vmatpush1.bf16.msra.mxu0 %v135
    %449 = vmatprep.subr.bf16.mxu0 %v138
    %450 = vmatpush1.bf16.msra.mxu0 %v137
    %451 = vmatprep.subr.bf16.mxu0 %v140
    %452 = vmatpush1.bf16.msra.mxu0 %v139
    %453 = vmatprep.subr.bf16.mxu0 %v142
    %454 = vmatpush1.bf16.msra.mxu0 %v141
    %455 = vmatprep.subr.bf16.mxu0 %v144
    %456 = vmatpush1.bf16.msra.mxu0 %v143
    %457 = vmatprep.subr.bf16.mxu0 %v146
    %458 = vmatpush1.bf16.msra.mxu0 %v145
    %459 = vmatprep.subr.bf16.mxu0 %v148
    %460 = vmatpush1.bf16.msra.mxu0 %v147
    %461 = vmatprep.subr.bf16.mxu0 0
    %462 = vmatpush1.bf16.msra.mxu0 0
    %463 = vmatprep.subr.bf16.mxu0 0
    %464 = vmatpush1.bf16.msra.mxu0 0
    %465 = vmatprep.subr.bf16.mxu0 0
    %466 = vmatpush1.bf16.msra.mxu0 0
    %467 = vmatprep.subr.bf16.mxu0 0
    %468 = vmatpush1.bf16.msra.mxu0 0
    %469 = vmatprep.subr.bf16.mxu0 0
    %470 = vmatpush1.bf16.msra.mxu0 0
    %471 = vmatprep.subr.bf16.mxu0 0
    %472 = vmatpush1.bf16.msra.mxu0 0
    %473 = vmatprep.subr.bf16.mxu0 0
    %474 = vmatpush1.bf16.msra.mxu0 0
    %475 = vmatprep.subr.bf16.mxu0 0
    %476 = vmatpush1.bf16.msra.mxu0 0
    %477 = vmatprep.mubr.bf16.mxu0 0
    %478 = vmatmul.mubr.bf16.gmra.mrb[0].mxu0 %v444
    %v479 = vpop.f32.mrb[0].mxu0
    %v480 = vadd.f32 0.0, %v479
    %v481 = vpop.f32.mrb[0].mxu0
    %v482 = vadd.f32 0.0, %v481
    %v483 = vpop.f32.mrb[0].mxu0
    %v484 = vpop.f32.mrb[0].mxu0
    %485 = vdwg.mxu0
    %v488 = vcombine.low %v480, %v482
    %v490 = vunpack.c.l.s4 1983009808
    %v491 = vunpack.c.0.s8 %v490
    %v492 = vlaneseq
    %v493 = vshrl.u32 %v492, 7
    %v494 = vsub.s32 %v491, %v493
    %v495 = vrot.slane %v488, %v494
    %v497 = vadd.f32 %v443, %v495
    %v498 = vtanh.pop %v497
    %v500 = vrot.slane %v497, 2
    %v502 = vxor.u32 %v500, 2147483648
    %v503 = vmul.f32 %v502, 1.442695
    %v504 = vpow.pop %v503
    %v505 = vadd.f32 %v504, 1.0
    %v506 = vrcp.pop %v505
    %v507 = vmul.f32 1.0, %v506
    %v508 = vsub.f32 %v498, %v440
    %v509 = vmul.f32 %v507, %v508
    %v510 = vadd.f32 %v440, %v509
    %s511 = scalar_lea.vmem [#allocation3], 10
    %v512 = vld [vmem:[%s511] sm:$0x3]
    %v513 = vunpack.c.l.bf16 %v512
    %v514 = vpack.c.bf16 %v510, %v510
    %515 = vmatprep.subr.bf16.mxu0 %v134
    %516 = vmatpush1.bf16.msra.mxu0 %v133
    %517 = vmatprep.subr.bf16.mxu0 %v136
    %518 = vmatpush1.bf16.msra.mxu0 %v135
    %519 = vmatprep.subr.bf16.mxu0 %v138
    %520 = vmatpush1.bf16.msra.mxu0 %v137
    %521 = vmatprep.subr.bf16.mxu0 %v140
    %522 = vmatpush1.bf16.msra.mxu0 %v139
    %523 = vmatprep.subr.bf16.mxu0 %v142
    %524 = vmatpush1.bf16.msra.mxu0 %v141
    %525 = vmatprep.subr.bf16.mxu0 %v144
    %526 = vmatpush1.bf16.msra.mxu0 %v143
    %527 = vmatprep.subr.bf16.mxu0 %v146
    %528 = vmatpush1.bf16.msra.mxu0 %v145
    %529 = vmatprep.subr.bf16.mxu0 %v148
    %530 = vmatpush1.bf16.msra.mxu0 %v147
    %531 = vmatprep.subr.bf16.mxu0 0
    %532 = vmatpush1.bf16.msra.mxu0 0
    %533 = vmatprep.subr.bf16.mxu0 0
    %534 = vmatpush1.bf16.msra.mxu0 0
    %535 = vmatprep.subr.bf16.mxu0 0
    %536 = vmatpush1.bf16.msra.mxu0 0
    %537 = vmatprep.subr.bf16.mxu0 0
    %538 = vmatpush1.bf16.msra.mxu0 0
    %539 = vmatprep.subr.bf16.mxu0 0
    %540 = vmatpush1.bf16.msra.mxu0 0
    %541 = vmatprep.subr.bf16.mxu0 0
    %542 = vmatpush1.bf16.msra.mxu0 0
    %543 = vmatprep.subr.bf16.mxu0 0
    %544 = vmatpush1.bf16.msra.mxu0 0
    %545 = vmatprep.subr.bf16.mxu0 0
    %546 = vmatpush1.bf16.msra.mxu0 0
    %547 = vmatprep.mubr.bf16.mxu0 0
    %548 = vmatmul.mubr.bf16.gmra.mrb[0].mxu0 %v514
    %v549 = vpop.f32.mrb[0].mxu0
    %v550 = vadd.f32 0.0, %v549
    %v551 = vpop.f32.mrb[0].mxu0
    %v552 = vadd.f32 0.0, %v551
    %v553 = vpop.f32.mrb[0].mxu0
    %v554 = vpop.f32.mrb[0].mxu0
    %555 = vdwg.mxu0
    %v558 = vcombine.low %v550, %v552
    %v560 = vunpack.c.l.s4 1983009808
    %v561 = vunpack.c.0.s8 %v560
    %v562 = vlaneseq
    %v563 = vshrl.u32 %v562, 7
    %v564 = vsub.s32 %v561, %v563
    %v565 = vrot.slane %v558, %v564
    %v567 = vadd.f32 %v513, %v565
    %v568 = vtanh.pop %v567
    %v570 = vrot.slane %v567, 2
    %v572 = vxor.u32 %v570, 2147483648
    %v573 = vmul.f32 %v572, 1.442695
    %v574 = vpow.pop %v573
    %v575 = vadd.f32 %v574, 1.0
    %v576 = vrcp.pop %v575
    %v577 = vmul.f32 1.0, %v576
    %v578 = vsub.f32 %v568, %v510
    %v579 = vmul.f32 %v577, %v578
    %v580 = vadd.f32 %v510, %v579
    %s581 = scalar_lea.vmem [#allocation3], 12
    %v582 = vld [vmem:[%s581] sm:$0x3]
    %v583 = vunpack.c.l.bf16 %v582
    %v584 = vpack.c.bf16 %v580, %v580
    %585 = vmatprep.subr.bf16.mxu0 %v134
    %586 = vmatpush1.bf16.msra.mxu0 %v133
    %587 = vmatprep.subr.bf16.mxu0 %v136
    %588 = vmatpush1.bf16.msra.mxu0 %v135
    %589 = vmatprep.subr.bf16.mxu0 %v138
    %590 = vmatpush1.bf16.msra.mxu0 %v137
    %591 = vmatprep.subr.bf16.mxu0 %v140
    %592 = vmatpush1.bf16.msra.mxu0 %v139
    %593 = vmatprep.subr.bf16.mxu0 %v142
    %594 = vmatpush1.bf16.msra.mxu0 %v141
    %595 = vmatprep.subr.bf16.mxu0 %v144
    %596 = vmatpush1.bf16.msra.mxu0 %v143
    %597 = vmatprep.subr.bf16.mxu0 %v146
    %598 = vmatpush1.bf16.msra.mxu0 %v145
    %599 = vmatprep.subr.bf16.mxu0 %v148
    %600 = vmatpush1.bf16.msra.mxu0 %v147
    %601 = vmatprep.subr.bf16.mxu0 0
    %602 = vmatpush1.bf16.msra.mxu0 0
    %603 = vmatprep.subr.bf16.mxu0 0
    %604 = vmatpush1.bf16.msra.mxu0 0
    %605 = vmatprep.subr.bf16.mxu0 0
    %606 = vmatpush1.bf16.msra.mxu0 0
    %607 = vmatprep.subr.bf16.mxu0 0
    %608 = vmatpush1.bf16.msra.mxu0 0
    %609 = vmatprep.subr.bf16.mxu0 0
    %610 = vmatpush1.bf16.msra.mxu0 0
    %611 = vmatprep.subr.bf16.mxu0 0
    %612 = vmatpush1.bf16.msra.mxu0 0
    %613 = vmatprep.subr.bf16.mxu0 0
    %614 = vmatpush1.bf16.msra.mxu0 0
    %615 = vmatprep.subr.bf16.mxu0 0
    %616 = vmatpush1.bf16.msra.mxu0 0
    %617 = vmatprep.mubr.bf16.mxu0 0
    %618 = vmatmul.mubr.bf16.gmra.mrb[0].mxu0 %v584
    %v619 = vpop.f32.mrb[0].mxu0
    %v620 = vadd.f32 0.0, %v619
    %v621 = vpop.f32.mrb[0].mxu0
    %v622 = vadd.f32 0.0, %v621
    %v623 = vpop.f32.mrb[0].mxu0
    %v624 = vpop.f32.mrb[0].mxu0
    %625 = vdwg.mxu0
    %v628 = vcombine.low %v620, %v622
    %v630 = vunpack.c.l.s4 1983009808
    %v631 = vunpack.c.0.s8 %v630
    %v632 = vlaneseq
    %v633 = vshrl.u32 %v632, 7
    %v634 = vsub.s32 %v631, %v633
    %v635 = vrot.slane %v628, %v634
    %v637 = vadd.f32 %v583, %v635
    %v638 = vtanh.pop %v637
    %v640 = vrot.slane %v637, 2
    %v642 = vxor.u32 %v640, 2147483648
    %v643 = vmul.f32 %v642, 1.442695
    %v644 = vpow.pop %v643
    %v645 = vadd.f32 %v644, 1.0
    %v646 = vrcp.pop %v645
    %v647 = vmul.f32 1.0, %v646
    %v648 = vsub.f32 %v638, %v580
    %v649 = vmul.f32 %v647, %v648
    %v650 = vadd.f32 %v580, %v649
    %s651 = scalar_lea.vmem [#allocation3], 14
    %v652 = vld [vmem:[%s651] sm:$0x3]
    %v653 = vunpack.c.l.bf16 %v652
    %v654 = vpack.c.bf16 %v650, %v650
    %655 = vmatprep.subr.bf16.mxu0 %v134
    %656 = vmatpush1.bf16.msra.mxu0 %v133
    %657 = vmatprep.subr.bf16.mxu0 %v136
    %658 = vmatpush1.bf16.msra.mxu0 %v135
    %659 = vmatprep.subr.bf16.mxu0 %v138
    %660 = vmatpush1.bf16.msra.mxu0 %v137
    %661 = vmatprep.subr.bf16.mxu0 %v140
    %662 = vmatpush1.bf16.msra.mxu0 %v139
    %663 = vmatprep.subr.bf16.mxu0 %v142
    %664 = vmatpush1.bf16.msra.mxu0 %v141
    %665 = vmatprep.subr.bf16.mxu0 %v144
    %666 = vmatpush1.bf16.msra.mxu0 %v143
    %667 = vmatprep.subr.bf16.mxu0 %v146
    %668 = vmatpush1.bf16.msra.mxu0 %v145
    %669 = vmatprep.subr.bf16.mxu0 %v148
    %670 = vmatpush1.bf16.msra.mxu0 %v147
    %671 = vmatprep.subr.bf16.mxu0 0
    %672 = vmatpush1.bf16.msra.mxu0 0
    %673 = vmatprep.subr.bf16.mxu0 0
    %674 = vmatpush1.bf16.msra.mxu0 0
    %675 = vmatprep.subr.bf16.mxu0 0
    %676 = vmatpush1.bf16.msra.mxu0 0
    %677 = vmatprep.subr.bf16.mxu0 0
    %678 = vmatpush1.bf16.msra.mxu0 0
    %679 = vmatprep.subr.bf16.mxu0 0
    %680 = vmatpush1.bf16.msra.mxu0 0
    %681 = vmatprep.subr.bf16.mxu0 0
    %682 = vmatpush1.bf16.msra.mxu0 0
    %683 = vmatprep.subr.bf16.mxu0 0
    %684 = vmatpush1.bf16.msra.mxu0 0
    %685 = vmatprep.subr.bf16.mxu0 0
    %686 = vmatpush1.bf16.msra.mxu0 0
    %687 = vmatprep.mubr.bf16.mxu0 0
    %688 = vmatmul.mubr.bf16.gmra.mrb[0].mxu0 %v654
    %v689 = vpop.f32.mrb[0].mxu0
    %v690 = vadd.f32 0.0, %v689
    %v691 = vpop.f32.mrb[0].mxu0
    %v692 = vadd.f32 0.0, %v691
    %v693 = vpop.f32.mrb[0].mxu0
    %v694 = vpop.f32.mrb[0].mxu0
    %695 = vdwg.mxu0
    %v698 = vcombine.low %v690, %v692
    %v700 = vunpack.c.l.s4 1983009808
    %v701 = vunpack.c.0.s8 %v700
    %v702 = vlaneseq
    %v703 = vshrl.u32 %v702, 7
    %v704 = vsub.s32 %v701, %v703
    %v705 = vrot.slane %v698, %v704
    %v707 = vadd.f32 %v653, %v705
    %v708 = vtanh.pop %v707
    %v710 = vrot.slane %v707, 2
    %v712 = vxor.u32 %v710, 2147483648
    %v713 = vmul.f32 %v712, 1.442695
    %v714 = vpow.pop %v713
    %v715 = vadd.f32 %v714, 1.0
    %v716 = vrcp.pop %v715
    %v717 = vmul.f32 1.0, %v716
    %v718 = vsub.f32 %v708, %v650
    %v719 = vmul.f32 %v717, %v718
    %v720 = vadd.f32 %v650, %v719
    %721 = vst [vmem:[#allocation2] sm:$0x3] %v720
    // Predicated region
    $region34: #{tpu_custom_call.1} parent=1 // pred_check
      %p722 = pneg %p60
    $region35: #{tpu_custom_call.1} parent=1 // pred_check_branch
      %724 = sbr.rel (%p722) target = $region37
    $region36: #{tpu_custom_call.1} parent=1 // pred_region
      %v725 = vpack.c.bf16 %v720, %v720
      %v726 = vld [vmem:[#allocation8] sm:$0xf]
      %v727 = vld [vmem:[#allocation8 + $0x4] sm:$0xf]
      %v728 = vld [vmem:[#allocation8 + $0x8] sm:$0xf]
      %v729 = vld [vmem:[#allocation8 + $0xc] sm:$0xf]
      %v730 = vld [vmem:[#allocation8 + $0x10] sm:$0xf]
      %v731 = vld [vmem:[#allocation8 + $0x14] sm:$0xf]
      %v732 = vld [vmem:[#allocation8 + $0x18] sm:$0xf]
      %v733 = vld [vmem:[#allocation8 + $0x1c] sm:$0xf]
      %v734 = vld [vmem:[#allocation8 + $0x20] sm:$0xf]
      %v735 = vld [vmem:[#allocation8 + $0x24] sm:$0xf]
      %v736 = vld [vmem:[#allocation8 + $0x28] sm:$0xf]
      %v737 = vld [vmem:[#allocation8 + $0x2c] sm:$0xf]
      %v738 = vld [vmem:[#allocation8 + $0x30] sm:$0xf]
      %v739 = vld [vmem:[#allocation8 + $0x34] sm:$0xf]
      %v740 = vld [vmem:[#allocation8 + $0x38] sm:$0xf]
      %v741 = vld [vmem:[#allocation8 + $0x3c] sm:$0xf]
      %v742 = vld [vmem:[%s3] sm:$0x1]
      %v744 = vlaneseq
      %v745 = vshrl.u32 %v744, 7
      %v746 = vsub.s32 0, %v745
      %v747 = vrot.slane %v742, %v746
      %v765 = vunpack.c.l.b16 %v726
      %v766 = vunpack.c.l.b16 %v727
      %v767 = vunpack.c.l.b16 %v728
      %v768 = vunpack.c.l.b16 %v729
      %v769 = vunpack.c.l.b16 %v730
      %v770 = vunpack.c.l.b16 %v731
      %v771 = vunpack.c.l.b16 %v732
      %v772 = vunpack.c.l.b16 %v733
      %v773 = vunpack.c.l.b16 %v734
      %v774 = vunpack.c.l.b16 %v735
      %v775 = vunpack.c.l.b16 %v736
      %v776 = vunpack.c.l.b16 %v737
      %v777 = vunpack.c.l.b16 %v738
      %v778 = vunpack.c.l.b16 %v739
      %v779 = vunpack.c.l.b16 %v740
      %v780 = vunpack.c.l.b16 %v741
      %v781 = vpack.c.b16 %v766, %v765
      %v782 = vpack.c.b16 %v768, %v767
      %v783 = vpack.c.b16 %v770, %v769
      %v784 = vpack.c.b16 %v772, %v771
      %v785 = vpack.c.b16 %v774, %v773
      %v786 = vpack.c.b16 %v776, %v775
      %v787 = vpack.c.b16 %v778, %v777
      %v788 = vpack.c.b16 %v780, %v779
      %797 = vmatprep.subr.bf16.mxu0 0
      %798 = vmatpush1.bf16.msra.mxu0 %v781
      %799 = vmatprep.subr.bf16.mxu0 0
      %800 = vmatpush1.bf16.msra.mxu0 %v782
      %801 = vmatprep.subr.bf16.mxu0 0
      %802 = vmatpush1.bf16.msra.mxu0 %v783
      %803 = vmatprep.subr.bf16.mxu0 0
      %804 = vmatpush1.bf16.msra.mxu0 %v784
      %805 = vmatprep.subr.bf16.mxu0 0
      %806 = vmatpush1.bf16.msra.mxu0 %v785
      %807 = vmatprep.subr.bf16.mxu0 0
      %808 = vmatpush1.bf16.msra.mxu0 %v786
      %809 = vmatprep.subr.bf16.mxu0 0
      %810 = vmatpush1.bf16.msra.mxu0 %v787
      %811 = vmatprep.subr.bf16.mxu0 0
      %812 = vmatpush1.bf16.msra.mxu0 %v788
      %813 = vmatprep.subr.bf16.mxu0 0
      %814 = vmatpush1.bf16.msra.mxu0 0
      %815 = vmatprep.subr.bf16.mxu0 0
      %816 = vmatpush1.bf16.msra.mxu0 0
      %817 = vmatprep.subr.bf16.mxu0 0
      %818 = vmatpush1.bf16.msra.mxu0 0
      %819 = vmatprep.subr.bf16.mxu0 0
      %820 = vmatpush1.bf16.msra.mxu0 0
      %821 = vmatprep.subr.bf16.mxu0 0
      %822 = vmatpush1.bf16.msra.mxu0 0
      %823 = vmatprep.subr.bf16.mxu0 0
      %824 = vmatpush1.bf16.msra.mxu0 0
      %825 = vmatprep.subr.bf16.mxu0 0
      %826 = vmatpush1.bf16.msra.mxu0 0
      %827 = vmatprep.subr.bf16.mxu0 0
      %828 = vmatpush1.bf16.msra.mxu0 0
      %829 = vmatprep.mubr.bf16.mxu0 0
      %830 = vmatmul.mubr.bf16.gmra.mrb[0].mxu0 %v725
      %v831 = vpop.f32.mrb[0].mxu0
      %v832 = vadd.f32 %v747, %v831
      %v833 = vpop.f32.mrb[0].mxu0
      %v834 = vpop.f32.mrb[0].mxu0
      %v835 = vpop.f32.mrb[0].mxu0
      %836 = vdwg.mxu0
      %837 = vst [vmem:[#allocation9] sm:$0x3] %v832
    $region37: #{tpu_custom_call.1} parent=1 // pred_fallthru
      _
    // Predicated region
    $region38: #{tpu_custom_call.1} parent=1 // pred_check
      _
    $region39: #{tpu_custom_call.1} parent=1 // pred_check_branch
      %839 = sbr.rel (0) target = $region41
    $region40: #{tpu_custom_call.1} parent=1 // pred_region
      %s841 = ssub.s32 32, 32
      %842 = vsyncadd [#allocation5], %s841
      %s844 = sshll.u32 [#allocation9], 4
      %s845 = int_to_ptr.vmem [resolvable:$true] %s844
      %847 = dma.vmem_to_hbm [thread:$0]  %s845, 32, %s4, [#allocation5]
    $region41: #{tpu_custom_call.1} parent=1 // pred_fallthru
      _
    // Predicated region
    $region42: #{tpu_custom_call.1} parent=1 // pred_check
      _
    $region43: #{tpu_custom_call.1} parent=1 // pred_check_branch
      %849 = sbr.rel (0) target = $region45
    $region44: #{tpu_custom_call.1} parent=1 // pred_region
      %850 = dma.done [#allocation5], 32
    $region45: #{tpu_custom_call.1} parent=1 // pred_fallthru
      _
    %851 = vsyncpa [#allocation4], 1
    %852 = vsyncpa [#allocation7], 1
    %853 = vsyncpa [#allocation5], 1

// kernel: tpu_custom_call.1
$region0: #{tpu_custom_call.1}
  #allocation0 [shape = 'u32[]', space=smem, size = 0x4, offset = 0x4, fixed_abs, tag = 'smem constant byte address 0x4 - core index']
  #allocation1 [shape = 'u32[144,128]{1,0:T(1,128)}', space=vmem, size = 0x12000, scoped, tag = 'internal scratch']
  #allocation2 [shape = 'f32[2,128]{1,0:T(2,128)}', space=vmem, size = 0x400, scoped, tag = 'scratch operand']
  %s0 = inlined_call_operand.hbm [shape: bf16[8,2,256], index: 0, kind: input, shape index: {}]
  %s1 = inlined_call_operand.hbm [shape: bf16[128,256], index: 1, kind: input, shape index: {}]
  %s2 = inlined_call_operand.hbm [shape: bf16[128,128], index: 2, kind: input, shape index: {}]
  %s3 = inlined_call_operand.vmem [shape: f32[1,128], index: 3, kind: input, shape index: {}]
  %s4 = inlined_call_operand.hbm [shape: f32[2,128], index: 4, kind: output, shape index: {}]
  %s5 = sld [smem:[#allocation0]]
  $region46: #{tpu_custom_call.1} parent=0
    _
  %s7 = ssub.s32 1, %s5
  %s8 = scalar_select 0, %s7, %s5
  $region1: #{tpu_custom_call.1} parent=0
    #allocation3 [shape = 'u8[8192]{0}', space=vmem, size = 0x2000, scoped, tag = 'input window, operand 0, single buffered']
    #allocation4 [shape = 's32[1]{0}', space=sflag, size = 0x4, scoped, tag = 'scoped memory for tpu_custom_call.1']
    #allocation5 [shape = 's32[1]{0}', space=sflag, size = 0x4, scoped, tag = 'scoped memory for tpu_custom_call.1']
    #allocation6 [shape = 'u8[65536]{0}', space=vmem, size = 0x10000, scoped, tag = 'input window, operand 1, single buffered']
    #allocation7 [shape = 's32[1]{0}', space=sflag, size = 0x4, scoped, tag = 'scoped memory for tpu_custom_call.1']
    #allocation8 [shape = 'u8[32768]{0}', space=vmem, size = 0x8000, scoped, tag = 'input window, operand 2, single buffered']
    #allocation9 [shape = 'u8[1024]{0}', space=vmem, size = 0x400, scoped, tag = 'output window, operand 0, single buffered']
    %9 = vsyncpa [#allocation4], 0
    %10 = vsyncpa [#allocation7], 0
    %11 = vsyncpa [#allocation5], 0
    // Predicated region
    $region2: #{tpu_custom_call.1} parent=1 // pred_check
      _
    $region3: #{tpu_custom_call.1} parent=1 // pred_check_branch
      %13 = sbr.rel (0) target = $region5
    $region4: #{tpu_custom_call.1} parent=1 // pred_region
      %s15 = ssub.s32 256, 256
      %16 = vsyncadd [#allocation4], %s15
      %s17 = sshll.u32 [#allocation3], 4
      %s18 = int_to_ptr.vmem [resolvable:$true] %s17
      %23 = dma.hbm_to_vmem [thread:$0]  %s0, 256, %s18, [#allocation4], 32, 32, 2
    $region5: #{tpu_custom_call.1} parent=1 // pred_fallthru
      _
    // Predicated region
    $region6: #{tpu_custom_call.1} parent=1 // pred_check
      _
    $region7: #{tpu_custom_call.1} parent=1 // pred_check_branch
      %25 = sbr.rel (0) target = $region9
    $region8: #{tpu_custom_call.1} parent=1 // pred_region
      %s27 = ssub.s32 2048, 2048
      %28 = vsyncadd [#allocation7], %s27
      %s29 = sshll.u32 [#allocation6], 4
      %s30 = int_to_ptr.vmem [resolvable:$true] %s29
      %35 = dma.hbm_to_vmem [thread:$0]  %s1, 2048, %s30, [#allocation7], 128, 128, 8
    $region9: #{tpu_custom_call.1} parent=1 // pred_fallthru
      _
    // Predicated region
    $region10: #{tpu_custom_call.1} parent=1 // pred_check
      _
    $region11: #{tpu_custom_call.1} parent=1 // pred_check_branch
      %37 = sbr.rel (0) target = $region13
    $region12: #{tpu_custom_call.1} parent=1 // pred_region
      %s39 = ssub.s32 1024, 1024
      %40 = vsyncadd [#allocation7], %s39
      %s41 = sshll.u32 [#allocation8], 4
      %s42 = int_to_ptr.vmem [resolvable:$true] %s41
      %47 = dma.hbm_to_vmem [thread:$0]  %s2, 1024, %s42, [#allocation7], 64, 64, 4
    $region13: #{tpu_custom_call.1} parent=1 // pred_fallthru
      _
    // Predicated region
    $region14: #{tpu_custom_call.1} parent=1 // pred_check
      _
    $region15: #{tpu_custom_call.1} parent=1 // pred_check_branch
      %49 = sbr.rel (0) target = $region17
    $region16: #{tpu_custom_call.1} parent=1 // pred_region
      _
    $region17: #{tpu_custom_call.1} parent=1 // pred_fallthru
      _
    // Predicated region
    $region18: #{tpu_custom_call.1} parent=1 // pred_check
      _
    $region19: #{tpu_custom_call.1} parent=1 // pred_check_branch
      %51 = sbr.rel (0) target = $region21
    $region20: #{tpu_custom_call.1} parent=1 // pred_region
      %52 = dma.done [#allocation4], 256
    $region21: #{tpu_custom_call.1} parent=1 // pred_fallthru
      _
    // Predicated region
    $region22: #{tpu_custom_call.1} parent=1 // pred_check
      _
    $region23: #{tpu_custom_call.1} parent=1 // pred_check_branch
      %54 = sbr.rel (0) target = $region25
    $region24: #{tpu_custom_call.1} parent=1 // pred_region
      %55 = dma.done [#allocation7], 2048
    $region25: #{tpu_custom_call.1} parent=1 // pred_fallthru
      _
    // Predicated region
    $region26: #{tpu_custom_call.1} parent=1 // pred_check
      _
    $region27: #{tpu_custom_call.1} parent=1 // pred_check_branch
      %57 = sbr.rel (0) target = $region29
    $region28: #{tpu_custom_call.1} parent=1 // pred_region
      %58 = dma.done [#allocation7], 1024
    $region29: #{tpu_custom_call.1} parent=1 // pred_fallthru
      _
    %p60 = scmp.eq.s32.totalorder 0, 0
    // Predicated region
    $region30: #{tpu_custom_call.1} parent=1 // pred_check
      %p61 = pneg %p60
    $region31: #{tpu_custom_call.1} parent=1 // pred_check_branch
      %63 = sbr.rel (%p61) target = $region33
    $region32: #{tpu_custom_call.1} parent=1 // pred_region
      %64 = vst [vmem:[#allocation2] sm:$0x3] 0.0
    $region33: #{tpu_custom_call.1} parent=1 // pred_fallthru
      _
    %v65 = vld [vmem:[#allocation6] sm:$0xff]
    %v66 = vld [vmem:[#allocation6 + $0x8] sm:$0xff]
    %v67 = vld [vmem:[#allocation6 + $0x10] sm:$0xff]
    %v68 = vld [vmem:[#allocation6 + $0x18] sm:$0xff]
    %v69 = vld [vmem:[#allocation6 + $0x20] sm:$0xff]
    %v70 = vld [vmem:[#allocation6 + $0x28] sm:$0xff]
    %v71 = vld [vmem:[#allocation6 + $0x30] sm:$0xff]
    %v72 = vld [vmem:[#allocation6 + $0x38] sm:$0xff]
    %v73 = vld [vmem:[#allocation6 + $0x40] sm:$0xff]
    %v74 = vld [vmem:[#allocation6 + $0x48] sm:$0xff]
    %v75 = vld [vmem:[#allocation6 + $0x50] sm:$0xff]
    %v76 = vld [vmem:[#allocation6 + $0x58] sm:$0xff]
    %v77 = vld [vmem:[#allocation6 + $0x60] sm:$0xff]
    %v78 = vld [vmem:[#allocation6 + $0x68] sm:$0xff]
    %v79 = vld [vmem:[#allocation6 + $0x70] sm:$0xff]
    %v80 = vld [vmem:[#allocation6 + $0x78] sm:$0xff]
    %v81 = vld [vmem:[#allocation2] sm:$0x3]
    %v82 = vld [vmem:[#allocation3] sm:$0x3]
    %v83 = vunpack.c.l.bf16 %v82
    %v84 = vpack.c.bf16 %v81, %v81
    %v101 = vunpack.c.l.b16 %v65
    %v102 = vunpack.c.h.b16 %v65
    %v103 = vunpack.c.l.b16 %v66
    %v104 = vunpack.c.h.b16 %v66
    %v105 = vunpack.c.l.b16 %v67
    %v106 = vunpack.c.h.b16 %v67
    %v107 = vunpack.c.l.b16 %v68
    %v108 = vunpack.c.h.b16 %v68
    %v109 = vunpack.c.l.b16 %v69
    %v110 = vunpack.c.h.b16 %v69
    %v111 = vunpack.c.l.b16 %v70
    %v112 = vunpack.c.h.b16 %v70
    %v113 = vunpack.c.l.b16 %v71
    %v114 = vunpack.c.h.b16 %v71
    %v115 = vunpack.c.l.b16 %v72
    %v116 = vunpack.c.h.b16 %v72
    %v117 = vunpack.c.l.b16 %v73
    %v118 = vunpack.c.h.b16 %v73
    %v119 = vunpack.c.l.b16 %v74
    %v120 = vunpack.c.h.b16 %v74
    %v121 = vunpack.c.l.b16 %v75
    %v122 = vunpack.c.h.b16 %v75
    %v123 = vunpack.c.l.b16 %v76
    %v124 = vunpack.c.h.b16 %v76
    %v125 = vunpack.c.l.b16 %v77
    %v126 = vunpack.c.h.b16 %v77
    %v127 = vunpack.c.l.b16 %v78
    %v128 = vunpack.c.h.b16 %v78
    %v129 = vunpack.c.l.b16 %v79
    %v130 = vunpack.c.h.b16 %v79
    %v131 = vunpack.c.l.b16 %v80
    %v132 = vunpack.c.h.b16 %v80
    %v133 = vpack.c.b16 %v103, %v101
    %v134 = vpack.c.b16 %v104, %v102
    %v135 = vpack.c.b16 %v107, %v105
    %v136 = vpack.c.b16 %v108, %v106
    %v137 = vpack.c.b16 %v111, %v109
    %v138 = vpack.c.b16 %v112, %v110
    %v139 = vpack.c.b16 %v115, %v113
    %v140 = vpack.c.b16 %v116, %v114
    %v141 = vpack.c.b16 %v119, %v117
    %v142 = vpack.c.b16 %v120, %v118
    %v143 = vpack.c.b16 %v123, %v121
    %v144 = vpack.c.b16 %v124, %v122
    %v145 = vpack.c.b16 %v127, %v125
    %v146 = vpack.c.b16 %v128, %v126
    %v147 = vpack.c.b16 %v131, %v129
    %v148 = vpack.c.b16 %v132, %v130
    %165 = vmatprep.subr.bf16.mxu0 %v134
    %166 = vmatpush1.bf16.msra.mxu0 %v133
    %167 = vmatprep.subr.bf16.mxu0 %v136
    %168 = vmatpush1.bf16.msra.mxu0 %v135
    %169 = vmatprep.subr.bf16.mxu0 %v138
    %170 = vmatpush1.bf16.msra.mxu0 %v137
    %171 = vmatprep.subr.bf16.mxu0 %v140
    %172 = vmatpush1.bf16.msra.mxu0 %v139
    %173 = vmatprep.subr.bf16.mxu0 %v142
    %174 = vmatpush1.bf16.msra.mxu0 %v141
    %175 = vmatprep.subr.bf16.mxu0 %v144
    %176 = vmatpush1.bf16.msra.mxu0 %v143
    %177 = vmatprep.subr.bf16.mxu0 %v146
    %178 = vmatpush1.bf16.msra.mxu0 %v145
    %179 = vmatprep.subr.bf16.mxu0 %v148
    %180 = vmatpush1.bf16.msra.mxu0 %v147
    %181 = vmatprep.subr.bf16.mxu0 0
    %182 = vmatpush1.bf16.msra.mxu0 0
    %183 = vmatprep.subr.bf16.mxu0 0
    %184 = vmatpush1.bf16.msra.mxu0 0
    %185 = vmatprep.subr.bf16.mxu0 0
    %186 = vmatpush1.bf16.msra.mxu0 0
    %187 = vmatprep.subr.bf16.mxu0 0
    %188 = vmatpush1.bf16.msra.mxu0 0
    %189 = vmatprep.subr.bf16.mxu0 0
    %190 = vmatpush1.bf16.msra.mxu0 0
    %191 = vmatprep.subr.bf16.mxu0 0
    %192 = vmatpush1.bf16.msra.mxu0 0
    %193 = vmatprep.subr.bf16.mxu0 0
    %194 = vmatpush1.bf16.msra.mxu0 0
    %195 = vmatprep.subr.bf16.mxu0 0
    %196 = vmatpush1.bf16.msra.mxu0 0
    %197 = vmatprep.mubr.bf16.mxu0 0
    %198 = vmatmul.mubr.bf16.gmra.mrb[0].mxu0 %v84
    %v199 = vpop.f32.mrb[0].mxu0
    %v200 = vadd.f32 0.0, %v199
    %v201 = vpop.f32.mrb[0].mxu0
    %v202 = vadd.f32 0.0, %v201
    %v203 = vpop.f32.mrb[0].mxu0
    %v204 = vpop.f32.mrb[0].mxu0
    %205 = vdwg.mxu0
    %v208 = vcombine.low %v200, %v202
    %v210 = vunpack.c.l.s4 1983009808
    %v211 = vunpack.c.0.s8 %v210
    %v212 = vlaneseq
    %v213 = vshrl.u32 %v212, 7
    %v214 = vsub.s32 %v211, %v213
    %v215 = vrot.slane %v208, %v214
    %v217 = vadd.f32 %v83, %v215
    %v218 = vtanh.pop %v217
    %v220 = vrot.slane %v217, 2
    %v222 = vxor.u32 %v220, 2147483648
    %v223 = vmul.f32 %v222, 1.442695
    %v224 = vpow.pop %v223
    %v225 = vadd.f32 %v224, 1.0
    %v226 = vrcp.pop %v225
    %v227 = vmul.f32 1.0, %v226
    %v228 = vsub.f32 %v218, %v81
    %v229 = vmul.f32 %v227, %v228
    %v230 = vadd.f32 %v81, %v229
    %s231 = scalar_lea.vmem [#allocation3], 2
    %v232 = vld [vmem:[%s231] sm:$0x3]
    %v233 = vunpack.c.l.bf16 %v232
    %v234 = vpack.c.bf16 %v230, %v230
    %235 = vmatprep.subr.bf16.mxu0 %v134
    %236 = vmatpush1.bf16.msra.mxu0 %v133
    %237 = vmatprep.subr.bf16.mxu0 %v136
    %238 = vmatpush1.bf16.msra.mxu0 %v135
    %239 = vmatprep.subr.bf16.mxu0 %v138
    %240 = vmatpush1.bf16.msra.mxu0 %v137
    %241 = vmatprep.subr.bf16.mxu0 %v140
    %242 = vmatpush1.bf16.msra.mxu0 %v139
    %243 = vmatprep.subr.bf16.mxu0 %v142
    %244 = vmatpush1.bf16.msra.mxu0 %v141
    %245 = vmatprep.subr.bf16.mxu0 %v144
    %246 = vmatpush1.bf16.msra.mxu0 %v143
    %247 = vmatprep.subr.bf16.mxu0 %v146
    %248 = vmatpush1.bf16.msra.mxu0 %v145
    %249 = vmatprep.subr.bf16.mxu0 %v148
    %250 = vmatpush1.bf16.msra.mxu0 %v147
    %251 = vmatprep.subr.bf16.mxu0 0
    %252 = vmatpush1.bf16.msra.mxu0 0
    %253 = vmatprep.subr.bf16.mxu0 0
    %254 = vmatpush1.bf16.msra.mxu0 0
    %255 = vmatprep.subr.bf16.mxu0 0
    %256 = vmatpush1.bf16.msra.mxu0 0
    %257 = vmatprep.subr.bf16.mxu0 0
    %258 = vmatpush1.bf16.msra.mxu0 0
    %259 = vmatprep.subr.bf16.mxu0 0
    %260 = vmatpush1.bf16.msra.mxu0 0
    %261 = vmatprep.subr.bf16.mxu0 0
    %262 = vmatpush1.bf16.msra.mxu0 0
    %263 = vmatprep.subr.bf16.mxu0 0
    %264 = vmatpush1.bf16.msra.mxu0 0
    %265 = vmatprep.subr.bf16.mxu0 0
    %266 = vmatpush1.bf16.msra.mxu0 0
    %267 = vmatprep.mubr.bf16.mxu0 0
    %268 = vmatmul.mubr.bf16.gmra.mrb[0].mxu0 %v234
    %v269 = vpop.f32.mrb[0].mxu0
    %v270 = vadd.f32 0.0, %v269
    %v271 = vpop.f32.mrb[0].mxu0
    %v272 = vadd.f32 0.0, %v271
    %v273 = vpop.f32.mrb[0].mxu0
    %v274 = vpop.f32.mrb[0].mxu0
    %275 = vdwg.mxu0
    %v278 = vcombine.low %v270, %v272
    %v280 = vunpack.c.l.s4 1983009808
    %v281 = vunpack.c.0.s8 %v280
    %v282 = vlaneseq
    %v283 = vshrl.u32 %v282, 7
    %v284 = vsub.s32 %v281, %v283
    %v285 = vrot.slane %v278, %v284
    %v287 = vadd.f32 %v233, %v285
    %v288 = vtanh.pop %v287
    %v290 = vrot.slane %v287, 2
    %v292 = vxor.u32 %v290, 2147483648
    %v293 = vmul.f32 %v292, 1.442695
    %v294 = vpow.pop %v293
    %v295 = vadd.f32 %v294, 1.0
    %v296 = vrcp.pop %v295
    %v297 = vmul.f32 1.0, %v296
    %v298 = vsub.f32 %v288, %v230
    %v299 = vmul.f32 %v297, %v298
    %v300 = vadd.f32 %v230, %v299
    %s301 = scalar_lea.vmem [#allocation3], 4
    %v302 = vld [vmem:[%s301] sm:$0x3]
    %v303 = vunpack.c.l.bf16 %v302
    %v304 = vpack.c.bf16 %v300, %v300
    %305 = vmatprep.subr.bf16.mxu0 %v134
    %306 = vmatpush1.bf16.msra.mxu0 %v133
    %307 = vmatprep.subr.bf16.mxu0 %v136
    %308 = vmatpush1.bf16.msra.mxu0 %v135
    %309 = vmatprep.subr.bf16.mxu0 %v138
    %310 = vmatpush1.bf16.msra.mxu0 %v137
    %311 = vmatprep.subr.bf16.mxu0 %v140
    %312 = vmatpush1.bf16.msra.mxu0 %v139
    %313 = vmatprep.subr.bf16.mxu0 %v142
    %314 = vmatpush1.bf16.msra.mxu0 %v141
    %315 = vmatprep.subr.bf16.mxu0 %v144
    %316 = vmatpush1.bf16.msra.mxu0 %v143
    %317 = vmatprep.subr.bf16.mxu0 %v146
    %318 = vmatpush1.bf16.msra.mxu0 %v145
    %319 = vmatprep.subr.bf16.mxu0 %v148
    %320 = vmatpush1.bf16.msra.mxu0 %v147
    %321 = vmatprep.subr.bf16.mxu0 0
    %322 = vmatpush1.bf16.msra.mxu0 0
    %323 = vmatprep.subr.bf16.mxu0 0
    %324 = vmatpush1.bf16.msra.mxu0 0
    %325 = vmatprep.subr.bf16.mxu0 0
    %326 = vmatpush1.bf16.msra.mxu0 0
    %327 = vmatprep.subr.bf16.mxu0 0
    %328 = vmatpush1.bf16.msra.mxu0 0
    %329 = vmatprep.subr.bf16.mxu0 0
    %330 = vmatpush1.bf16.msra.mxu0 0
    %331 = vmatprep.subr.bf16.mxu0 0
    %332 = vmatpush1.bf16.msra.mxu0 0
    %333 = vmatprep.subr.bf16.mxu0 0
    %334 = vmatpush1.bf16.msra.mxu0 0
    %335 = vmatprep.subr.bf16.mxu0 0
    %336 = vmatpush1.bf16.msra.mxu0 0
    %337 = vmatprep.mubr.bf16.mxu0 0
    %338 = vmatmul.mubr.bf16.gmra.mrb[0].mxu0 %v304
    %v339 = vpop.f32.mrb[0].mxu0
    %v340 = vadd.f32 0.0, %v339
    %v341 = vpop.f32.mrb[0].mxu0
    %v342 = vadd.f32 0.0, %v341
    %v343 = vpop.f32.mrb[0].mxu0
    %v344 = vpop.f32.mrb[0].mxu0
    %345 = vdwg.mxu0
    %v348 = vcombine.low %v340, %v342
    %v350 = vunpack.c.l.s4 1983009808
    %v351 = vunpack.c.0.s8 %v350
    %v352 = vlaneseq
    %v353 = vshrl.u32 %v352, 7
    %v354 = vsub.s32 %v351, %v353
    %v355 = vrot.slane %v348, %v354
    %v357 = vadd.f32 %v303, %v355
    %v358 = vtanh.pop %v357
    %v360 = vrot.slane %v357, 2
    %v362 = vxor.u32 %v360, 2147483648
    %v363 = vmul.f32 %v362, 1.442695
    %v364 = vpow.pop %v363
    %v365 = vadd.f32 %v364, 1.0
    %v366 = vrcp.pop %v365
    %v367 = vmul.f32 1.0, %v366
    %v368 = vsub.f32 %v358, %v300
    %v369 = vmul.f32 %v367, %v368
    %v370 = vadd.f32 %v300, %v369
    %s371 = scalar_lea.vmem [#allocation3], 6
    %v372 = vld [vmem:[%s371] sm:$0x3]
    %v373 = vunpack.c.l.bf16 %v372
    %v374 = vpack.c.bf16 %v370, %v370
    %375 = vmatprep.subr.bf16.mxu0 %v134
    %376 = vmatpush1.bf16.msra.mxu0 %v133
    %377 = vmatprep.subr.bf16.mxu0 %v136
    %378 = vmatpush1.bf16.msra.mxu0 %v135
    %379 = vmatprep.subr.bf16.mxu0 %v138
    %380 = vmatpush1.bf16.msra.mxu0 %v137
    %381 = vmatprep.subr.bf16.mxu0 %v140
    %382 = vmatpush1.bf16.msra.mxu0 %v139
    %383 = vmatprep.subr.bf16.mxu0 %v142
    %384 = vmatpush1.bf16.msra.mxu0 %v141
    %385 = vmatprep.subr.bf16.mxu0 %v144
    %386 = vmatpush1.bf16.msra.mxu0 %v143
    %387 = vmatprep.subr.bf16.mxu0 %v146
    %388 = vmatpush1.bf16.msra.mxu0 %v145
    %389 = vmatprep.subr.bf16.mxu0 %v148
    %390 = vmatpush1.bf16.msra.mxu0 %v147
    %391 = vmatprep.subr.bf16.mxu0 0
    %392 = vmatpush1.bf16.msra.mxu0 0
    %393 = vmatprep.subr.bf16.mxu0 0
    %394 = vmatpush1.bf16.msra.mxu0 0
    %395 = vmatprep.subr.bf16.mxu0 0
    %396 = vmatpush1.bf16.msra.mxu0 0
    %397 = vmatprep.subr.bf16.mxu0 0
    %398 = vmatpush1.bf16.msra.mxu0 0
    %399 = vmatprep.subr.bf16.mxu0 0
    %400 = vmatpush1.bf16.msra.mxu0 0
    %401 = vmatprep.subr.bf16.mxu0 0
    %402 = vmatpush1.bf16.msra.mxu0 0
    %403 = vmatprep.subr.bf16.mxu0 0
    %404 = vmatpush1.bf16.msra.mxu0 0
    %405 = vmatprep.subr.bf16.mxu0 0
    %406 = vmatpush1.bf16.msra.mxu0 0
    %407 = vmatprep.mubr.bf16.mxu0 0
    %408 = vmatmul.mubr.bf16.gmra.mrb[0].mxu0 %v374
    %v409 = vpop.f32.mrb[0].mxu0
    %v410 = vadd.f32 0.0, %v409
    %v411 = vpop.f32.mrb[0].mxu0
    %v412 = vadd.f32 0.0, %v411
    %v413 = vpop.f32.mrb[0].mxu0
    %v414 = vpop.f32.mrb[0].mxu0
    %415 = vdwg.mxu0
    %v418 = vcombine.low %v410, %v412
    %v420 = vunpack.c.l.s4 1983009808
    %v421 = vunpack.c.0.s8 %v420
    %v422 = vlaneseq
    %v423 = vshrl.u32 %v422, 7
    %v424 = vsub.s32 %v421, %v423
    %v425 = vrot.slane %v418, %v424
    %v427 = vadd.f32 %v373, %v425
    %v428 = vtanh.pop %v427
    %v430 = vrot.slane %v427, 2
    %v432 = vxor.u32 %v430, 2147483648
    %v433 = vmul.f32 %v432, 1.442695
    %v434 = vpow.pop %v433
    %v435 = vadd.f32 %v434, 1.0
    %v436 = vrcp.pop %v435
    %v437 = vmul.f32 1.0, %v436
    %v438 = vsub.f32 %v428, %v370
    %v439 = vmul.f32 %v437, %v438
    %v440 = vadd.f32 %v370, %v439
    %s441 = scalar_lea.vmem [#allocation3], 8
    %v442 = vld [vmem:[%s441] sm:$0x3]
    %v443 = vunpack.c.l.bf16 %v442
    %v444 = vpack.c.bf16 %v440, %v440
    %445 = vmatprep.subr.bf16.mxu0 %v134
    %446 = vmatpush1.bf16.msra.mxu0 %v133
    %447 = vmatprep.subr.bf16.mxu0 %v136
    %448 = vmatpush1.bf16.msra.mxu0 %v135
    %449 = vmatprep.subr.bf16.mxu0 %v138
    %450 = vmatpush1.bf16.msra.mxu0 %v137
    %451 = vmatprep.subr.bf16.mxu0 %v140
    %452 = vmatpush1.bf16.msra.mxu0 %v139
    %453 = vmatprep.subr.bf16.mxu0 %v142
    %454 = vmatpush1.bf16.msra.mxu0 %v141
    %455 = vmatprep.subr.bf16.mxu0 %v144
    %456 = vmatpush1.bf16.msra.mxu0 %v143
    %457 = vmatprep.subr.bf16.mxu0 %v146
    %458 = vmatpush1.bf16.msra.mxu0 %v145
    %459 = vmatprep.subr.bf16.mxu0 %v148
    %460 = vmatpush1.bf16.msra.mxu0 %v147
    %461 = vmatprep.subr.bf16.mxu0 0
    %462 = vmatpush1.bf16.msra.mxu0 0
    %463 = vmatprep.subr.bf16.mxu0 0
    %464 = vmatpush1.bf16.msra.mxu0 0
    %465 = vmatprep.subr.bf16.mxu0 0
    %466 = vmatpush1.bf16.msra.mxu0 0
    %467 = vmatprep.subr.bf16.mxu0 0
    %468 = vmatpush1.bf16.msra.mxu0 0
    %469 = vmatprep.subr.bf16.mxu0 0
    %470 = vmatpush1.bf16.msra.mxu0 0
    %471 = vmatprep.subr.bf16.mxu0 0
    %472 = vmatpush1.bf16.msra.mxu0 0
    %473 = vmatprep.subr.bf16.mxu0 0
    %474 = vmatpush1.bf16.msra.mxu0 0
    %475 = vmatprep.subr.bf16.mxu0 0
    %476 = vmatpush1.bf16.msra.mxu0 0
    %477 = vmatprep.mubr.bf16.mxu0 0
    %478 = vmatmul.mubr.bf16.gmra.mrb[0].mxu0 %v444
    %v479 = vpop.f32.mrb[0].mxu0
    %v480 = vadd.f32 0.0, %v479
    %v481 = vpop.f32.mrb[0].mxu0
    %v482 = vadd.f32 0.0, %v481
    %v483 = vpop.f32.mrb[0].mxu0
    %v484 = vpop.f32.mrb[0].mxu0
    %485 = vdwg.mxu0
    %v488 = vcombine.low %v480, %v482
    %v490 = vunpack.c.l.s4 1983009808
    %v491 = vunpack.c.0.s8 %v490
    %v492 = vlaneseq
    %v493 = vshrl.u32 %v492, 7
    %v494 = vsub.s32 %v491, %v493
    %v495 = vrot.slane %v488, %v494
    %v497 = vadd.f32 %v443, %v495
    %v498 = vtanh.pop %v497
    %v500 = vrot.slane %v497, 2
    %v502 = vxor.u32 %v500, 2147483648
    %v503 = vmul.f32 %v502, 1.442695
    %v504 = vpow.pop %v503
    %v505 = vadd.f32 %v504, 1.0
    %v506 = vrcp.pop %v505
    %v507 = vmul.f32 1.0, %v506
    %v508 = vsub.f32 %v498, %v440
    %v509 = vmul.f32 %v507, %v508
    %v510 = vadd.f32 %v440, %v509
    %s511 = scalar_lea.vmem [#allocation3], 10
    %v512 = vld [vmem:[%s511] sm:$0x3]
    %v513 = vunpack.c.l.bf16 %v512
    %v514 = vpack.c.bf16 %v510, %v510
    %515 = vmatprep.subr.bf16.mxu0 %v134
    %516 = vmatpush1.bf16.msra.mxu0 %v133
    %517 = vmatprep.subr.bf16.mxu0 %v136
    %518 = vmatpush1.bf16.msra.mxu0 %v135
    %519 = vmatprep.subr.bf16.mxu0 %v138
    %520 = vmatpush1.bf16.msra.mxu0 %v137
    %521 = vmatprep.subr.bf16.mxu0 %v140
    %522 = vmatpush1.bf16.msra.mxu0 %v139
    %523 = vmatprep.subr.bf16.mxu0 %v142
    %524 = vmatpush1.bf16.msra.mxu0 %v141
    %525 = vmatprep.subr.bf16.mxu0 %v144
    %526 = vmatpush1.bf16.msra.mxu0 %v143
    %527 = vmatprep.subr.bf16.mxu0 %v146
    %528 = vmatpush1.bf16.msra.mxu0 %v145
    %529 = vmatprep.subr.bf16.mxu0 %v148
    %530 = vmatpush1.bf16.msra.mxu0 %v147
    %531 = vmatprep.subr.bf16.mxu0 0
    %532 = vmatpush1.bf16.msra.mxu0 0
    %533 = vmatprep.subr.bf16.mxu0 0
    %534 = vmatpush1.bf16.msra.mxu0 0
    %535 = vmatprep.subr.bf16.mxu0 0
    %536 = vmatpush1.bf16.msra.mxu0 0
    %537 = vmatprep.subr.bf16.mxu0 0
    %538 = vmatpush1.bf16.msra.mxu0 0
    %539 = vmatprep.subr.bf16.mxu0 0
    %540 = vmatpush1.bf16.msra.mxu0 0
    %541 = vmatprep.subr.bf16.mxu0 0
    %542 = vmatpush1.bf16.msra.mxu0 0
    %543 = vmatprep.subr.bf16.mxu0 0
    %544 = vmatpush1.bf16.msra.mxu0 0
    %545 = vmatprep.subr.bf16.mxu0 0
    %546 = vmatpush1.bf16.msra.mxu0 0
    %547 = vmatprep.mubr.bf16.mxu0 0
    %548 = vmatmul.mubr.bf16.gmra.mrb[0].mxu0 %v514
    %v549 = vpop.f32.mrb[0].mxu0
    %v550 = vadd.f32 0.0, %v549
    %v551 = vpop.f32.mrb[0].mxu0
    %v552 = vadd.f32 0.0, %v551
    %v553 = vpop.f32.mrb[0].mxu0
    %v554 = vpop.f32.mrb[0].mxu0
    %555 = vdwg.mxu0
    %v558 = vcombine.low %v550, %v552
    %v560 = vunpack.c.l.s4 1983009808
    %v561 = vunpack.c.0.s8 %v560
    %v562 = vlaneseq
    %v563 = vshrl.u32 %v562, 7
    %v564 = vsub.s32 %v561, %v563
    %v565 = vrot.slane %v558, %v564
    %v567 = vadd.f32 %v513, %v565
    %v568 = vtanh.pop %v567
    %v570 = vrot.slane %v567, 2
    %v572 = vxor.u32 %v570, 2147483648
    %v573 = vmul.f32 %v572, 1.442695
    %v574 = vpow.pop %v573
    %v575 = vadd.f32 %v574, 1.0
    %v576 = vrcp.pop %v575
    %v577 = vmul.f32 1.0, %v576
    %v578 = vsub.f32 %v568, %v510
    %v579 = vmul.f32 %v577, %v578
    %v580 = vadd.f32 %v510, %v579
    %s581 = scalar_lea.vmem [#allocation3], 12
    %v582 = vld [vmem:[%s581] sm:$0x3]
    %v583 = vunpack.c.l.bf16 %v582
    %v584 = vpack.c.bf16 %v580, %v580
    %585 = vmatprep.subr.bf16.mxu0 %v134
    %586 = vmatpush1.bf16.msra.mxu0 %v133
    %587 = vmatprep.subr.bf16.mxu0 %v136
    %588 = vmatpush1.bf16.msra.mxu0 %v135
    %589 = vmatprep.subr.bf16.mxu0 %v138
    %590 = vmatpush1.bf16.msra.mxu0 %v137
    %591 = vmatprep.subr.bf16.mxu0 %v140
    %592 = vmatpush1.bf16.msra.mxu0 %v139
    %593 = vmatprep.subr.bf16.mxu0 %v142
    %594 = vmatpush1.bf16.msra.mxu0 %v141
    %595 = vmatprep.subr.bf16.mxu0 %v144
    %596 = vmatpush1.bf16.msra.mxu0 %v143
    %597 = vmatprep.subr.bf16.mxu0 %v146
    %598 = vmatpush1.bf16.msra.mxu0 %v145
    %599 = vmatprep.subr.bf16.mxu0 %v148
    %600 = vmatpush1.bf16.msra.mxu0 %v147
    %601 = vmatprep.subr.bf16.mxu0 0
    %602 = vmatpush1.bf16.msra.mxu0 0
    %603 = vmatprep.subr.bf16.mxu0 0
    %604 = vmatpush1.bf16.msra.mxu0 0
    %605 = vmatprep.subr.bf16.mxu0 0
    %606 = vmatpush1.bf16.msra.mxu0 0
    %607 = vmatprep.subr.bf16.mxu0 0
    %608 = vmatpush1.bf16.msra.mxu0 0
    %609 = vmatprep.subr.bf16.mxu0 0
    %610 = vmatpush1.bf16.msra.mxu0 0
    %611 = vmatprep.subr.bf16.mxu0 0
    %612 = vmatpush1.bf16.msra.mxu0 0
    %613 = vmatprep.subr.bf16.mxu0 0
    %614 = vmatpush1.bf16.msra.mxu0 0
    %615 = vmatprep.subr.bf16.mxu0 0
    %616 = vmatpush1.bf16.msra.mxu0 0
    %617 = vmatprep.mubr.bf16.mxu0 0
    %618 = vmatmul.mubr.bf16.gmra.mrb[0].mxu0 %v584
    %v619 = vpop.f32.mrb[0].mxu0
    %v620 = vadd.f32 0.0, %v619
    %v621 = vpop.f32.mrb[0].mxu0
    %v622 = vadd.f32 0.0, %v621
    %v623 = vpop.f32.mrb[0].mxu0
    %v624 = vpop.f32.mrb[0].mxu0
    %625 = vdwg.mxu0
    %v628 = vcombine.low %v620, %v622
    %v630 = vunpack.c.l.s4 1983009808
    %v631 = vunpack.c.0.s8 %v630
    %v632 = vlaneseq
    %v633 = vshrl.u32 %v632, 7
    %v634 = vsub.s32 %v631, %v633
    %v635 = vrot.slane %v628, %v634
    %v637 = vadd.f32 %v583, %v635
    %v638 = vtanh.pop %v637
    %v640 = vrot.slane %v637, 2
    %v642 = vxor.u32 %v640, 2147483648
    %v643 = vmul.f32 %v642, 1.442695
    %v644 = vpow.pop %v643
    %v645 = vadd.f32 %v644, 1.0
    %v646 = vrcp.pop %v645
    %v647 = vmul.f32 1.0, %v646
    %v648 = vsub.f32 %v638, %v580
    %v649 = vmul.f32 %v647, %v648
    %v650 = vadd.f32 %v580, %v649
    %s651 = scalar_lea.vmem [#allocation3], 14
    %v652 = vld [vmem:[%s651] sm:$0x3]
    %v653 = vunpack.c.l.bf16 %v652
    %v654 = vpack.c.bf16 %v650, %v650
    %655 = vmatprep.subr.bf16.mxu0 %v134
    %656 = vmatpush1.bf16.msra.mxu0 %v133
    %657 = vmatprep.subr.bf16.mxu0 %v136
    %658 = vmatpush1.bf16.msra.mxu0 %v135
    %659 = vmatprep.subr.bf16.mxu0 %v138
    %660 = vmatpush1.bf16.msra.mxu0 %v137
    %661 = vmatprep.subr.bf16.mxu0 %v140
    %662 = vmatpush1.bf16.msra.mxu0 %v139
    %663 = vmatprep.subr.bf16.mxu0 %v142
    %664 = vmatpush1.bf16.msra.mxu0 %v141
    %665 = vmatprep.subr.bf16.mxu0 %v144
    %666 = vmatpush1.bf16.msra.mxu0 %v143
    %667 = vmatprep.subr.bf16.mxu0 %v146
    %668 = vmatpush1.bf16.msra.mxu0 %v145
    %669 = vmatprep.subr.bf16.mxu0 %v148
    %670 = vmatpush1.bf16.msra.mxu0 %v147
    %671 = vmatprep.subr.bf16.mxu0 0
    %672 = vmatpush1.bf16.msra.mxu0 0
    %673 = vmatprep.subr.bf16.mxu0 0
    %674 = vmatpush1.bf16.msra.mxu0 0
    %675 = vmatprep.subr.bf16.mxu0 0
    %676 = vmatpush1.bf16.msra.mxu0 0
    %677 = vmatprep.subr.bf16.mxu0 0
    %678 = vmatpush1.bf16.msra.mxu0 0
    %679 = vmatprep.subr.bf16.mxu0 0
    %680 = vmatpush1.bf16.msra.mxu0 0
    %681 = vmatprep.subr.bf16.mxu0 0
    %682 = vmatpush1.bf16.msra.mxu0 0
    %683 = vmatprep.subr.bf16.mxu0 0
    %684 = vmatpush1.bf16.msra.mxu0 0
    %685 = vmatprep.subr.bf16.mxu0 0
    %686 = vmatpush1.bf16.msra.mxu0 0
    %687 = vmatprep.mubr.bf16.mxu0 0
    %688 = vmatmul.mubr.bf16.gmra.mrb[0].mxu0 %v654
    %v689 = vpop.f32.mrb[0].mxu0
    %v690 = vadd.f32 0.0, %v689
    %v691 = vpop.f32.mrb[0].mxu0
    %v692 = vadd.f32 0.0, %v691
    %v693 = vpop.f32.mrb[0].mxu0
    %v694 = vpop.f32.mrb[0].mxu0
    %695 = vdwg.mxu0
    %v698 = vcombine.low %v690, %v692
    %v700 = vunpack.c.l.s4 1983009808
    %v701 = vunpack.c.0.s8 %v700
    %v702 = vlaneseq
    %v703 = vshrl.u32 %v702, 7
    %v704 = vsub.s32 %v701, %v703
    %v705 = vrot.slane %v698, %v704
    %v707 = vadd.f32 %v653, %v705
    %v708 = vtanh.pop %v707
    %v710 = vrot.slane %v707, 2
    %v712 = vxor.u32 %v710, 2147483648
    %v713 = vmul.f32 %v712, 1.442695
    %v714 = vpow.pop %v713
    %v715 = vadd.f32 %v714, 1.0
    %v716 = vrcp.pop %v715
    %v717 = vmul.f32 1.0, %v716
    %v718 = vsub.f32 %v708, %v650
    %v719 = vmul.f32 %v717, %v718
    %v720 = vadd.f32 %v650, %v719
    %721 = vst [vmem:[#allocation2] sm:$0x3] %v720
    // Predicated region
    $region34: #{tpu_custom_call.1} parent=1 // pred_check
      %p722 = pneg %p60
    $region35: #{tpu_custom_call.1} parent=1 // pred_check_branch
      %724 = sbr.rel (%p722) target = $region37
    $region36: #{tpu_custom_call.1} parent=1 // pred_region
      %v725 = vpack.c.bf16 %v720, %v720
      %v726 = vld [vmem:[#allocation8] sm:$0xf]
      %v727 = vld [vmem:[#allocation8 + $0x4] sm:$0xf]
      %v728 = vld [vmem:[#allocation8 + $0x8] sm:$0xf]
      %v729 = vld [vmem:[#allocation8 + $0xc] sm:$0xf]
      %v730 = vld [vmem:[#allocation8 + $0x10] sm:$0xf]
      %v731 = vld [vmem:[#allocation8 + $0x14] sm:$0xf]
      %v732 = vld [vmem:[#allocation8 + $0x18] sm:$0xf]
      %v733 = vld [vmem:[#allocation8 + $0x1c] sm:$0xf]
      %v734 = vld [vmem:[#allocation8 + $0x20] sm:$0xf]
      %v735 = vld [vmem:[#allocation8 + $0x24] sm:$0xf]
      %v736 = vld [vmem:[#allocation8 + $0x28] sm:$0xf]
      %v737 = vld [vmem:[#allocation8 + $0x2c] sm:$0xf]
      %v738 = vld [vmem:[#allocation8 + $0x30] sm:$0xf]
      %v739 = vld [vmem:[#allocation8 + $0x34] sm:$0xf]
      %v740 = vld [vmem:[#allocation8 + $0x38] sm:$0xf]
      %v741 = vld [vmem:[#allocation8 + $0x3c] sm:$0xf]
      %v742 = vld [vmem:[%s3] sm:$0x1]
      %v744 = vlaneseq
      %v745 = vshrl.u32 %v744, 7
      %v746 = vsub.s32 0, %v745
      %v747 = vrot.slane %v742, %v746
      %v765 = vunpack.c.l.b16 %v726
      %v766 = vunpack.c.l.b16 %v727
      %v767 = vunpack.c.l.b16 %v728
      %v768 = vunpack.c.l.b16 %v729
      %v769 = vunpack.c.l.b16 %v730
      %v770 = vunpack.c.l.b16 %v731
      %v771 = vunpack.c.l.b16 %v732
      %v772 = vunpack.c.l.b16 %v733
      %v773 = vunpack.c.l.b16 %v734
      %v774 = vunpack.c.l.b16 %v735
      %v775 = vunpack.c.l.b16 %v736
      %v776 = vunpack.c.l.b16 %v737
      %v777 = vunpack.c.l.b16 %v738
      %v778 = vunpack.c.l.b16 %v739
      %v779 = vunpack.c.l.b16 %v740
      %v780 = vunpack.c.l.b16 %v741
      %v781 = vpack.c.b16 %v766, %v765
      %v782 = vpack.c.b16 %v768, %v767
      %v783 = vpack.c.b16 %v770, %v769
      %v784 = vpack.c.b16 %v772, %v771
      %v785 = vpack.c.b16 %v774, %v773
      %v786 = vpack.c.b16 %v776, %v775
      %v787 = vpack.c.b16 %v778, %v777
      %v788 = vpack.c.b16 %v780, %v779
      %797 = vmatprep.subr.bf16.mxu0 0
      %798 = vmatpush1.bf16.msra.mxu0 %v781
      %799 = vmatprep.subr.bf16.mxu0 0
      %800 = vmatpush1.bf16.msra.mxu0 %v782
      %801 = vmatprep.subr.bf16.mxu0 0
      %802 = vmatpush1.bf16.msra.mxu0 %v783
      %803 = vmatprep.subr.bf16.mxu0 0
      %804 = vmatpush1.bf16.msra.mxu0 %v784
      %805 = vmatprep.subr.bf16.mxu0 0
      %806 = vmatpush1.bf16.msra.mxu0 %v785
      %807 = vmatprep.subr.bf16.mxu0 0
      %808 = vmatpush1.bf16.msra.mxu0 %v786
      %809 = vmatprep.subr.bf16.mxu0 0
      %810 = vmatpush1.bf16.msra.mxu0 %v787
      %811 = vmatprep.subr.bf16.mxu0 0
      %812 = vmatpush1.bf16.msra.mxu0 %v788
      %813 = vmatprep.subr.bf16.mxu0 0
      %814 = vmatpush1.bf16.msra.mxu0 0
      %815 = vmatprep.subr.bf16.mxu0 0
      %816 = vmatpush1.bf16.msra.mxu0 0
      %817 = vmatprep.subr.bf16.mxu0 0
      %818 = vmatpush1.bf16.msra.mxu0 0
      %819 = vmatprep.subr.bf16.mxu0 0
      %820 = vmatpush1.bf16.msra.mxu0 0
      %821 = vmatprep.subr.bf16.mxu0 0
      %822 = vmatpush1.bf16.msra.mxu0 0
      %823 = vmatprep.subr.bf16.mxu0 0
      %824 = vmatpush1.bf16.msra.mxu0 0
      %825 = vmatprep.subr.bf16.mxu0 0
      %826 = vmatpush1.bf16.msra.mxu0 0
      %827 = vmatprep.subr.bf16.mxu0 0
      %828 = vmatpush1.bf16.msra.mxu0 0
      %829 = vmatprep.mubr.bf16.mxu0 0
      %830 = vmatmul.mubr.bf16.gmra.mrb[0].mxu0 %v725
      %v831 = vpop.f32.mrb[0].mxu0
      %v832 = vadd.f32 %v747, %v831
      %v833 = vpop.f32.mrb[0].mxu0
      %v834 = vpop.f32.mrb[0].mxu0
      %v835 = vpop.f32.mrb[0].mxu0
      %836 = vdwg.mxu0
      %837 = vst [vmem:[#allocation9] sm:$0x3] %v832
    $region37: #{tpu_custom_call.1} parent=1 // pred_fallthru
      _
    // Predicated region
    $region38: #{tpu_custom_call.1} parent=1 // pred_check
      _
    $region39: #{tpu_custom_call.1} parent=1 // pred_check_branch
      %839 = sbr.rel (0) target = $region41
    $region40: #{tpu_custom_call.1} parent=1 // pred_region
      %s841 = ssub.s32 32, 32
      %842 = vsyncadd [#allocation5], %s841
      %s844 = sshll.u32 [#allocation9], 4
      %s845 = int_to_ptr.vmem [resolvable:$true] %s844
      %847 = dma.vmem_to_hbm [thread:$0]  %s845, 32, %s4, [#allocation5]
    $region41: #{tpu_custom_call.1} parent=1 // pred_fallthru
      _
    // Predicated region
    $region42: #{tpu_custom_call.1} parent=1 // pred_check
      _
    $region43: #{tpu_custom_call.1} parent=1 // pred_check_branch
      %849 = sbr.rel (0) target = $region45
    $region44: #{tpu_custom_call.1} parent=1 // pred_region
      %850 = dma.done [#allocation5], 32
    $region45: #{tpu_custom_call.1} parent=1 // pred_fallthru
      _
    %851 = vsyncpa [#allocation4], 1
    %852 = vsyncpa [#allocation7], 1
    %853 = vsyncpa [#allocation5], 1

</llo_original>
